<compile_context>
chip_gen: v5e
topology: v5e:2x2
jax: 0.10.0
libtpu: 0.0.40
codegen_flags: <defaults>
</compile_context>

<pallas_src>
import jax
import jax.numpy as jnp
from jax import lax
from jax.experimental import pallas as pl
from jax.experimental.pallas import tpu as pltpu


NEG = -1e30  # finite "-inf" for padded labels (avoids inf-inf NaNs)


def _round_up(n, m):
    return (n + m - 1) // m * m


def crf_inside_kernel(x_ref, w_ref, exp_trans_ref, cmax_ref, lmask_ref,
                      out_ref, emis_ref):
    # x_ref:        (T, Bb, Fp)  feature sequences for a tile of Bb instances
    # w_ref:        (Fp, Lp)     emission weights ("self.weights"), zero-padded
    # exp_trans_ref:(Lp, Lp)     exp(trans - per-column max), padded
    # cmax_ref:     (1, Lp)      per-destination-column max of trans
    # lmask_ref:    (1, Lp)      0 for real labels, NEG for padded labels
    # out_ref:      (1, Bb)      lane-dense logZ per instance in the tile
    # emis_ref:     (T, Bb, Lp)  f32 VMEM scratch for emission scores
    T, Bb, Fp = x_ref.shape
    Lp = w_ref.shape[1]

    # Fused emission matmul for the whole tile: (T*Bb, Fp) @ (Fp, Lp) on MXU.
    emis_ref[...] = jnp.dot(
        x_ref[...].reshape(T * Bb, Fp),
        w_ref[...],
        preferred_element_type=jnp.float32,
    ).reshape(T, Bb, Lp)

    exp_trans = exp_trans_ref[...]          # (Lp, Lp)
    cmax = cmax_ref[...]                    # (1, Lp)
    tiny = jnp.float32(jnp.finfo(jnp.float32).tiny)

    # alpha_0 = emissions at t=0; padded labels forced to ~ -inf.
    alpha0 = emis_ref[0] + lmask_ref[...]   # (Bb, Lp)

    def step(t, alpha):
        m = jnp.max(alpha, axis=-1, keepdims=True)                  # (Bb, 1)
        # logsumexp_i(alpha[i] + trans[i, j]) via stabilized exp-matmul (MXU).
        s = jnp.dot(jnp.exp(alpha - m), exp_trans,
                    preferred_element_type=jnp.float32)              # (Bb, Lp)
        return m + cmax + jnp.log(jnp.maximum(s, tiny)) + emis_ref[t]

    # alpha stays in registers; unroll short fixed-length chains.
    alpha = lax.fori_loop(1, T, step, alpha0, unroll=(T <= 32))

    # Final logsumexp over labels, emitted lane-dense as (1, Bb):
    # transpose once (tile-aligned 32-bit transpose), reduce over sublanes.
    alpha_t = jnp.transpose(alpha)                                   # (Lp, Bb)
    m = jnp.max(alpha_t, axis=0, keepdims=True)                      # (1, Bb)
    z = jnp.sum(jnp.exp(alpha_t - m), axis=0, keepdims=True)         # (1, Bb)
    out_ref[...] = m + jnp.log(z)


def crf_inside(x, w, trans, *, block_b=128):
    """Pallas forward: log-partition ("network.inside()") per instance."""
    B, T, F = x.shape
    L = w.shape[1]
    assert w.shape[0] == F and trans.shape == (L, L)
    assert block_b % 128 == 0, "batch tile must be lane-aligned (multiple of 128)"

    Fp = _round_up(F, 128)
    Lp = _round_up(L, 128)
    Bb = block_b
    Bp = _round_up(B, Bb)

    x = x.astype(jnp.float32)
    w = w.astype(jnp.float32)
    trans = trans.astype(jnp.float32)

    # Pad to lane-dense shapes (zero feature pad is exact; padded labels get
    # NEG transition scores + NEG mask so they never contribute to logZ).
    xp = jnp.zeros((Bp, T, Fp), jnp.float32).at[:B, :, :F].set(x)
    xt = jnp.transpose(xp, (1, 0, 2))                     # (T, Bp, Fp)
    wp = jnp.zeros((Fp, Lp), jnp.float32).at[:F, :L].set(w)
    tp = jnp.full((Lp, Lp), NEG, jnp.float32).at[:L, :L].set(trans)

    # Hoisted (once per call, outside the grid): stabilized transition matrix.
    cmax = jnp.max(tp, axis=0, keepdims=True)             # (1, Lp)
    exp_trans = jnp.exp(tp - cmax)                        # (Lp, Lp)
    lmask = jnp.full((1, Lp), NEG, jnp.float32).at[:, :L].set(0.0)

    num_tiles = Bp // Bb
    # VMEM footprint per tile (Bb=128, T=8): x 512KB (x2 buf) + emis 512KB
    # + weights/trans ~130KB  -> well under the default scoped VMEM on
    # v5e (16 MiB) / v6e (32 MiB) / v7x (32 of 64 MiB); no limit override needed.
    out = pl.pallas_call(
        crf_inside_kernel,
        out_shape=jax.ShapeDtypeStruct((1, Bp), jnp.float32),
        grid_spec=pltpu.PrefetchScalarGridSpec(
            num_scalar_prefetch=0,
            grid=(num_tiles,),
            in_specs=[
                pl.BlockSpec((T, Bb, Fp), lambda b: (0, b, 0)),
                pl.BlockSpec((Fp, Lp), lambda b: (0, 0)),
                pl.BlockSpec((Lp, Lp), lambda b: (0, 0)),
                pl.BlockSpec((1, Lp), lambda b: (0, 0)),
                pl.BlockSpec((1, Lp), lambda b: (0, 0)),
            ],
            out_specs=pl.BlockSpec((1, Bb), lambda b: (0, b)),
            scratch_shapes=[pltpu.VMEM((T, Bb, Lp), jnp.float32)],
        ),
        compiler_params=pltpu.CompilerParams(
            dimension_semantics=("parallel",),   # batch tiles -> both TCs on v7x
        ),
    )(xt, wp, exp_trans, cmax, lmask)
    return out[0, :B]


def crf_inside_ref(x, w, trans):
    """Pure-JAX reference of the inside algorithm."""
    emis = jnp.einsum("btf,fl->btl", x, w)                    # (B, T, L)

    def scan_step(alpha, e_t):
        scores = alpha[:, :, None] + trans[None, :, :]        # (B, L, L)
        new = jax.scipy.special.logsumexp(scores, axis=1) + e_t
        return new, None

    alpha0 = emis[:, 0, :]
    rest = jnp.moveaxis(emis[:, 1:, :], 1, 0)                 # (T-1, B, L)
    alpha, _ = lax.scan(scan_step, alpha0, rest)
    return jax.scipy.special.logsumexp(alpha, axis=-1)        # (B,)


if __name__ == "__main__":
    # TODO(synk): LBFGS training loop / network compilation / thread handling in
    # NetworkModel are host-side orchestration with no Pallas equivalent; only
    # forward() = network.inside() is implemented as a kernel.
    B, T, F, L = 2, 8, 32, 16

    key = jax.random.PRNGKey(0)
    kx, kw, kt = jax.random.split(key, 3)
    x = jax.random.normal(kx, (B, T, F), dtype=jnp.float32)
    # `lock_it()` creates weights = Parameter(torch.randn(gnp.size())); init
    # deterministically here (scaled for numerical sanity of the synthetic DP).
    w = 0.1 * jax.random.normal(kw, (F, L), dtype=jnp.float32)
    trans = 0.1 * jax.random.normal(kt, (L, L), dtype=jnp.float32)

    logz = crf_inside(x, w, trans)
    jax.block_until_ready(logz)

    logz_ref = crf_inside_ref(x, w, trans)
    assert jnp.allclose(logz, logz_ref, atol=1e-4, rtol=1e-4), (logz, logz_ref)

    print("KERNEL_OK")
</pallas_src>

<mosaic_0001>
module attributes {stable_mosaic.version = 11 : i64} {
  func.func @crf_inside_kernel(%arg0: i32, %arg1: memref<8x128x128xf32, #tpu.memory_space<vmem>>, %arg2: memref<128x128xf32, #tpu.memory_space<vmem>>, %arg3: memref<128x128xf32, #tpu.memory_space<vmem>>, %arg4: memref<1x128xf32, #tpu.memory_space<vmem>>, %arg5: memref<1x128xf32, #tpu.memory_space<vmem>>, %arg6: memref<1x128xf32, #tpu.memory_space<vmem>>, %arg7: memref<8x128x128xf32, #tpu.memory_space<vmem>>) attributes {dimension_semantics = [#tpu.dimension_semantics<parallel>], iteration_bounds = array<i64: 1>, scalar_prefetch = 0 : i64, scratch_operands = 1 : i64, tpu.core_type = #tpu.core_type<tc>, window_params = [{transform_indices = @transform_0, window_bounds = array<i64: 8, 128, 128>}, {pipeline_mode = #tpu.pipeline_mode<synchronous>, transform_indices = @transform_1, window_bounds = array<i64: 128, 128>}, {pipeline_mode = #tpu.pipeline_mode<synchronous>, transform_indices = @transform_2, window_bounds = array<i64: 128, 128>}, {pipeline_mode = #tpu.pipeline_mode<synchronous>, transform_indices = @transform_3, window_bounds = array<i64: 1, 128>}, {pipeline_mode = #tpu.pipeline_mode<synchronous>, transform_indices = @transform_4, window_bounds = array<i64: 1, 128>}, {transform_indices = @transform_5, window_bounds = array<i64: 1, 128>}]} {
    %c0 = arith.constant 0 : index
    %c0_0 = arith.constant 0 : index
    %c0_1 = arith.constant 0 : index
    %0 = vector.load %arg1[%c0, %c0_0, %c0_1] : memref<8x128x128xf32, #tpu.memory_space<vmem>>, vector<8x128x128xf32>
    %1 = vector.shape_cast %0 : vector<8x128x128xf32> to vector<1024x128xf32>
    %c0_2 = arith.constant 0 : index
    %c0_3 = arith.constant 0 : index
    %2 = vector.load %arg2[%c0_2, %c0_3] : memref<128x128xf32, #tpu.memory_space<vmem>>, vector<128x128xf32>
    %cst = arith.constant dense<0.000000e+00> : vector<1024x128xf32>
    %3 = tpu.matmul %1, %2, %cst {dimension_numbers = #tpu.dot_dimension_numbers<[1], [0], [0], [1], [0, 0, 1, 1], [], []>} : vector<1024x128xf32>, vector<128x128xf32>, vector<1024x128xf32> -> vector<1024x128xf32>
    %4 = vector.shape_cast %3 : vector<1024x128xf32> to vector<8x128x128xf32>
    %c0_4 = arith.constant 0 : index
    %c0_5 = arith.constant 0 : index
    %c0_6 = arith.constant 0 : index
    %5 = vector.load %arg7[%c0_4, %c0_5, %c0_6] : memref<8x128x128xf32, #tpu.memory_space<vmem>>, vector<8x128x128xf32>
    tpu.vector_store %arg7[%c0_4, %c0_5, %c0_6], %4 {strides = array<i32>} : memref<8x128x128xf32, #tpu.memory_space<vmem>>, vector<8x128x128xf32>,
    %c0_7 = arith.constant 0 : index
    %c0_8 = arith.constant 0 : index
    %6 = vector.load %arg3[%c0_7, %c0_8] : memref<128x128xf32, #tpu.memory_space<vmem>>, vector<128x128xf32>
    %c0_9 = arith.constant 0 : index
    %c0_10 = arith.constant 0 : index
    %7 = vector.load %arg4[%c0_9, %c0_10] : memref<1x128xf32, #tpu.memory_space<vmem>>, vector<1x128xf32>
    %c0_11 = arith.constant 0 : index
    %c0_12 = arith.constant 0 : index
    %c0_13 = arith.constant 0 : index
    %8 = vector.load %arg7[%c0_11, %c0_12, %c0_13] : memref<8x128x128xf32, #tpu.memory_space<vmem>>, vector<1x128x128xf32>
    %9 = vector.shape_cast %8 : vector<1x128x128xf32> to vector<128x128xf32>
    %c0_14 = arith.constant 0 : index
    %c0_15 = arith.constant 0 : index
    %10 = vector.load %arg5[%c0_14, %c0_15] : memref<1x128xf32, #tpu.memory_space<vmem>>, vector<1x128xf32>
    %11 = vector.broadcast %10 : vector<1x128xf32> to vector<128x128xf32>
    %12 = arith.addf %9, %11 : vector<128x128xf32>
    %cst_16 = arith.constant 1.17549435E-38 : f32
    %c1_i32 = arith.constant 1 : i32
    %cst_17 = arith.constant dense<0xFF800000> : vector<128xf32>
    %13 = vector.multi_reduction <maximumf>, %12, %cst_17 [1] : vector<128x128xf32> to vector<128xf32>
    %14 = vector.shape_cast %13 : vector<128xf32> to vector<128x1xf32>
    %15 = vector.broadcast %14 : vector<128x1xf32> to vector<128x128xf32>
    %16 = arith.subf %12, %15 : vector<128x128xf32>
    %17 = math.exp %16 : vector<128x128xf32>
    %cst_18 = arith.constant dense<0.000000e+00> : vector<128x128xf32>
    %18 = tpu.matmul %17, %6, %cst_18 {dimension_numbers = #tpu.dot_dimension_numbers<[1], [0], [0], [1], [0, 0, 1, 1], [], []>} : vector<128x128xf32>, vector<128x128xf32>, vector<128x128xf32> -> vector<128x128xf32>
    %19 = vector.broadcast %14 : vector<128x1xf32> to vector<128x128xf32>
    %20 = vector.broadcast %7 : vector<1x128xf32> to vector<128x128xf32>
    %21 = arith.addf %19, %20 : vector<128x128xf32>
    %22 = vector.broadcast %cst_16 : f32 to vector<128x128xf32>
    %23 = arith.maximumf %18, %22 : vector<128x128xf32>
    %24 = math.log %23 : vector<128x128xf32>
    %25 = arith.addf %21, %24 : vector<128x128xf32>
    %26 = arith.index_cast %c1_i32 : i32 to index
    %c0_19 = arith.constant 0 : index
    %c0_20 = arith.constant 0 : index
    %27 = vector.load %arg7[%26, %c0_19, %c0_20] : memref<8x128x128xf32, #tpu.memory_space<vmem>>, vector<1x128x128xf32>
    %28 = vector.shape_cast %27 : vector<1x128x128xf32> to vector<128x128xf32>
    %29 = arith.addf %25, %28 : vector<128x128xf32>
    %c2_i32 = arith.constant 2 : i32
    %cst_21 = arith.constant dense<0xFF800000> : vector<128xf32>
    %30 = vector.multi_reduction <maximumf>, %29, %cst_21 [1] : vector<128x128xf32> to vector<128xf32>
    %31 = vector.shape_cast %30 : vector<128xf32> to vector<128x1xf32>
    %32 = vector.broadcast %31 : vector<128x1xf32> to vector<128x128xf32>
    %33 = arith.subf %29, %32 : vector<128x128xf32>
    %34 = math.exp %33 : vector<128x128xf32>
    %cst_22 = arith.constant dense<0.000000e+00> : vector<128x128xf32>
    %35 = tpu.matmul %34, %6, %cst_22 {dimension_numbers = #tpu.dot_dimension_numbers<[1], [0], [0], [1], [0, 0, 1, 1], [], []>} : vector<128x128xf32>, vector<128x128xf32>, vector<128x128xf32> -> vector<128x128xf32>
    %36 = vector.broadcast %31 : vector<128x1xf32> to vector<128x128xf32>
    %37 = vector.broadcast %7 : vector<1x128xf32> to vector<128x128xf32>
    %38 = arith.addf %36, %37 : vector<128x128xf32>
    %39 = vector.broadcast %cst_16 : f32 to vector<128x128xf32>
    %40 = arith.maximumf %35, %39 : vector<128x128xf32>
    %41 = math.log %40 : vector<128x128xf32>
    %42 = arith.addf %38, %41 : vector<128x128xf32>
    %43 = arith.index_cast %c2_i32 : i32 to index
    %c0_23 = arith.constant 0 : index
    %c0_24 = arith.constant 0 : index
    %44 = vector.load %arg7[%43, %c0_23, %c0_24] : memref<8x128x128xf32, #tpu.memory_space<vmem>>, vector<1x128x128xf32>
    %45 = vector.shape_cast %44 : vector<1x128x128xf32> to vector<128x128xf32>
    %46 = arith.addf %42, %45 : vector<128x128xf32>
    %c3_i32 = arith.constant 3 : i32
    %cst_25 = arith.constant dense<0xFF800000> : vector<128xf32>
    %47 = vector.multi_reduction <maximumf>, %46, %cst_25 [1] : vector<128x128xf32> to vector<128xf32>
    %48 = vector.shape_cast %47 : vector<128xf32> to vector<128x1xf32>
    %49 = vector.broadcast %48 : vector<128x1xf32> to vector<128x128xf32>
    %50 = arith.subf %46, %49 : vector<128x128xf32>
    %51 = math.exp %50 : vector<128x128xf32>
    %cst_26 = arith.constant dense<0.000000e+00> : vector<128x128xf32>
    %52 = tpu.matmul %51, %6, %cst_26 {dimension_numbers = #tpu.dot_dimension_numbers<[1], [0], [0], [1], [0, 0, 1, 1], [], []>} : vector<128x128xf32>, vector<128x128xf32>, vector<128x128xf32> -> vector<128x128xf32>
    %53 = vector.broadcast %48 : vector<128x1xf32> to vector<128x128xf32>
    %54 = vector.broadcast %7 : vector<1x128xf32> to vector<128x128xf32>
    %55 = arith.addf %53, %54 : vector<128x128xf32>
    %56 = vector.broadcast %cst_16 : f32 to vector<128x128xf32>
    %57 = arith.maximumf %52, %56 : vector<128x128xf32>
    %58 = math.log %57 : vector<128x128xf32>
    %59 = arith.addf %55, %58 : vector<128x128xf32>
    %60 = arith.index_cast %c3_i32 : i32 to index
    %c0_27 = arith.constant 0 : index
    %c0_28 = arith.constant 0 : index
    %61 = vector.load %arg7[%60, %c0_27, %c0_28] : memref<8x128x128xf32, #tpu.memory_space<vmem>>, vector<1x128x128xf32>
    %62 = vector.shape_cast %61 : vector<1x128x128xf32> to vector<128x128xf32>
    %63 = arith.addf %59, %62 : vector<128x128xf32>
    %c4_i32 = arith.constant 4 : i32
    %cst_29 = arith.constant dense<0xFF800000> : vector<128xf32>
    %64 = vector.multi_reduction <maximumf>, %63, %cst_29 [1] : vector<128x128xf32> to vector<128xf32>
    %65 = vector.shape_cast %64 : vector<128xf32> to vector<128x1xf32>
    %66 = vector.broadcast %65 : vector<128x1xf32> to vector<128x128xf32>
    %67 = arith.subf %63, %66 : vector<128x128xf32>
    %68 = math.exp %67 : vector<128x128xf32>
    %cst_30 = arith.constant dense<0.000000e+00> : vector<128x128xf32>
    %69 = tpu.matmul %68, %6, %cst_30 {dimension_numbers = #tpu.dot_dimension_numbers<[1], [0], [0], [1], [0, 0, 1, 1], [], []>} : vector<128x128xf32>, vector<128x128xf32>, vector<128x128xf32> -> vector<128x128xf32>
    %70 = vector.broadcast %65 : vector<128x1xf32> to vector<128x128xf32>
    %71 = vector.broadcast %7 : vector<1x128xf32> to vector<128x128xf32>
    %72 = arith.addf %70, %71 : vector<128x128xf32>
    %73 = vector.broadcast %cst_16 : f32 to vector<128x128xf32>
    %74 = arith.maximumf %69, %73 : vector<128x128xf32>
    %75 = math.log %74 : vector<128x128xf32>
    %76 = arith.addf %72, %75 : vector<128x128xf32>
    %77 = arith.index_cast %c4_i32 : i32 to index
    %c0_31 = arith.constant 0 : index
    %c0_32 = arith.constant 0 : index
    %78 = vector.load %arg7[%77, %c0_31, %c0_32] : memref<8x128x128xf32, #tpu.memory_space<vmem>>, vector<1x128x128xf32>
    %79 = vector.shape_cast %78 : vector<1x128x128xf32> to vector<128x128xf32>
    %80 = arith.addf %76, %79 : vector<128x128xf32>
    %c5_i32 = arith.constant 5 : i32
    %cst_33 = arith.constant dense<0xFF800000> : vector<128xf32>
    %81 = vector.multi_reduction <maximumf>, %80, %cst_33 [1] : vector<128x128xf32> to vector<128xf32>
    %82 = vector.shape_cast %81 : vector<128xf32> to vector<128x1xf32>
    %83 = vector.broadcast %82 : vector<128x1xf32> to vector<128x128xf32>
    %84 = arith.subf %80, %83 : vector<128x128xf32>
    %85 = math.exp %84 : vector<128x128xf32>
    %cst_34 = arith.constant dense<0.000000e+00> : vector<128x128xf32>
    %86 = tpu.matmul %85, %6, %cst_34 {dimension_numbers = #tpu.dot_dimension_numbers<[1], [0], [0], [1], [0, 0, 1, 1], [], []>} : vector<128x128xf32>, vector<128x128xf32>, vector<128x128xf32> -> vector<128x128xf32>
    %87 = vector.broadcast %82 : vector<128x1xf32> to vector<128x128xf32>
    %88 = vector.broadcast %7 : vector<1x128xf32> to vector<128x128xf32>
    %89 = arith.addf %87, %88 : vector<128x128xf32>
    %90 = vector.broadcast %cst_16 : f32 to vector<128x128xf32>
    %91 = arith.maximumf %86, %90 : vector<128x128xf32>
    %92 = math.log %91 : vector<128x128xf32>
    %93 = arith.addf %89, %92 : vector<128x128xf32>
    %94 = arith.index_cast %c5_i32 : i32 to index
    %c0_35 = arith.constant 0 : index
    %c0_36 = arith.constant 0 : index
    %95 = vector.load %arg7[%94, %c0_35, %c0_36] : memref<8x128x128xf32, #tpu.memory_space<vmem>>, vector<1x128x128xf32>
    %96 = vector.shape_cast %95 : vector<1x128x128xf32> to vector<128x128xf32>
    %97 = arith.addf %93, %96 : vector<128x128xf32>
    %c6_i32 = arith.constant 6 : i32
    %cst_37 = arith.constant dense<0xFF800000> : vector<128xf32>
    %98 = vector.multi_reduction <maximumf>, %97, %cst_37 [1] : vector<128x128xf32> to vector<128xf32>
    %99 = vector.shape_cast %98 : vector<128xf32> to vector<128x1xf32>
    %100 = vector.broadcast %99 : vector<128x1xf32> to vector<128x128xf32>
    %101 = arith.subf %97, %100 : vector<128x128xf32>
    %102 = math.exp %101 : vector<128x128xf32>
    %cst_38 = arith.constant dense<0.000000e+00> : vector<128x128xf32>
    %103 = tpu.matmul %102, %6, %cst_38 {dimension_numbers = #tpu.dot_dimension_numbers<[1], [0], [0], [1], [0, 0, 1, 1], [], []>} : vector<128x128xf32>, vector<128x128xf32>, vector<128x128xf32> -> vector<128x128xf32>
    %104 = vector.broadcast %99 : vector<128x1xf32> to vector<128x128xf32>
    %105 = vector.broadcast %7 : vector<1x128xf32> to vector<128x128xf32>
    %106 = arith.addf %104, %105 : vector<128x128xf32>
    %107 = vector.broadcast %cst_16 : f32 to vector<128x128xf32>
    %108 = arith.maximumf %103, %107 : vector<128x128xf32>
    %109 = math.log %108 : vector<128x128xf32>
    %110 = arith.addf %106, %109 : vector<128x128xf32>
    %111 = arith.index_cast %c6_i32 : i32 to index
    %c0_39 = arith.constant 0 : index
    %c0_40 = arith.constant 0 : index
    %112 = vector.load %arg7[%111, %c0_39, %c0_40] : memref<8x128x128xf32, #tpu.memory_space<vmem>>, vector<1x128x128xf32>
    %113 = vector.shape_cast %112 : vector<1x128x128xf32> to vector<128x128xf32>
    %114 = arith.addf %110, %113 : vector<128x128xf32>
    %c7_i32 = arith.constant 7 : i32
    %cst_41 = arith.constant dense<0xFF800000> : vector<128xf32>
    %115 = vector.multi_reduction <maximumf>, %114, %cst_41 [1] : vector<128x128xf32> to vector<128xf32>
    %116 = vector.shape_cast %115 : vector<128xf32> to vector<128x1xf32>
    %117 = vector.broadcast %116 : vector<128x1xf32> to vector<128x128xf32>
    %118 = arith.subf %114, %117 : vector<128x128xf32>
    %119 = math.exp %118 : vector<128x128xf32>
    %cst_42 = arith.constant dense<0.000000e+00> : vector<128x128xf32>
    %120 = tpu.matmul %119, %6, %cst_42 {dimension_numbers = #tpu.dot_dimension_numbers<[1], [0], [0], [1], [0, 0, 1, 1], [], []>} : vector<128x128xf32>, vector<128x128xf32>, vector<128x128xf32> -> vector<128x128xf32>
    %121 = vector.broadcast %116 : vector<128x1xf32> to vector<128x128xf32>
    %122 = vector.broadcast %7 : vector<1x128xf32> to vector<128x128xf32>
    %123 = arith.addf %121, %122 : vector<128x128xf32>
    %124 = vector.broadcast %cst_16 : f32 to vector<128x128xf32>
    %125 = arith.maximumf %120, %124 : vector<128x128xf32>
    %126 = math.log %125 : vector<128x128xf32>
    %127 = arith.addf %123, %126 : vector<128x128xf32>
    %128 = arith.index_cast %c7_i32 : i32 to index
    %c0_43 = arith.constant 0 : index
    %c0_44 = arith.constant 0 : index
    %129 = vector.load %arg7[%128, %c0_43, %c0_44] : memref<8x128x128xf32, #tpu.memory_space<vmem>>, vector<1x128x128xf32>
    %130 = vector.shape_cast %129 : vector<1x128x128xf32> to vector<128x128xf32>
    %131 = arith.addf %127, %130 : vector<128x128xf32>
    %c7_i32_45 = arith.constant 7 : i32
    %132 = tpu.transpose %131, [1, 0] : vector<128x128xf32> -> vector<128x128xf32>
    %cst_46 = arith.constant dense<0xFF800000> : vector<128xf32>
    %133 = vector.multi_reduction <maximumf>, %132, %cst_46 [0] : vector<128x128xf32> to vector<128xf32>
    %134 = vector.shape_cast %133 : vector<128xf32> to vector<1x128xf32>
    %135 = vector.broadcast %134 : vector<1x128xf32> to vector<128x128xf32>
    %136 = arith.subf %132, %135 : vector<128x128xf32>
    %137 = math.exp %136 : vector<128x128xf32>
    %cst_47 = arith.constant dense<0.000000e+00> : vector<128xf32>
    %138 = vector.multi_reduction <add>, %137, %cst_47 [0] : vector<128x128xf32> to vector<128xf32>
    %139 = vector.shape_cast %138 : vector<128xf32> to vector<1x128xf32>
    %140 = math.log %139 : vector<1x128xf32>
    %141 = arith.addf %134, %140 : vector<1x128xf32>
    %c0_48 = arith.constant 0 : index
    %c0_49 = arith.constant 0 : index
    %142 = vector.load %arg6[%c0_48, %c0_49] : memref<1x128xf32, #tpu.memory_space<vmem>>, vector<1x128xf32>
    tpu.vector_store %arg6[%c0_48, %c0_49], %141 {strides = array<i32>} : memref<1x128xf32, #tpu.memory_space<vmem>>, vector<1x128xf32>,
    return
  }
  func.func @transform_0(%arg0: i32) -> (i32, i32, i32) {
    %c0_i32 = arith.constant 0 : i32
    %c0_i32_0 = arith.constant 0 : i32
    %c0_i32_1 = arith.constant 0 : i32
    return %c0_i32, %arg0, %c0_i32_0 : i32, i32, i32
  }
  func.func @transform_1(%arg0: i32) -> (i32, i32) {
    %c0_i32 = arith.constant 0 : i32
    %c0_i32_0 = arith.constant 0 : i32
    %c0_i32_1 = arith.constant 0 : i32
    return %c0_i32, %c0_i32_0 : i32, i32
  }
  func.func @transform_2(%arg0: i32) -> (i32, i32) {
    %c0_i32 = arith.constant 0 : i32
    %c0_i32_0 = arith.constant 0 : i32
    %c0_i32_1 = arith.constant 0 : i32
    return %c0_i32, %c0_i32_0 : i32, i32
  }
  func.func @transform_3(%arg0: i32) -> (i32, i32) {
    %c0_i32 = arith.constant 0 : i32
    %c0_i32_0 = arith.constant 0 : i32
    %c0_i32_1 = arith.constant 0 : i32
    return %c0_i32, %c0_i32_0 : i32, i32
  }
  func.func @transform_4(%arg0: i32) -> (i32, i32) {
    %c0_i32 = arith.constant 0 : i32
    %c0_i32_0 = arith.constant 0 : i32
    %c0_i32_1 = arith.constant 0 : i32
    return %c0_i32, %c0_i32_0 : i32, i32
  }
  func.func @transform_5(%arg0: i32) -> (i32, i32) {
    %c0_i32 = arith.constant 0 : i32
    %c0_i32_0 = arith.constant 0 : i32
    return %c0_i32, %arg0 : i32, i32
  }
}

</mosaic_0001>

<llo_original>
// kernel: tpu_custom_call.1
$region0: #{tpu_custom_call.1}
  #allocation0 [shape = 'u32[]', space=smem, size = 0x4, offset = 0x4, fixed_abs, tag = 'smem constant byte address 0x4 - core index']
  #allocation1 [shape = 'u32[72,128]{1,0:T(1,128)}', space=vmem, size = 0x9000, scoped, tag = 'internal scratch']
  #allocation2 [shape = 'f32[8,128,128]{2,1,0:T(8,128)}', space=vmem, size = 0x80000, scoped, tag = 'scratch operand']
  %s0 = inlined_call_operand.hbm [shape: f32[8,128,128], index: 0, kind: input, shape index: {}]
  %s1 = inlined_call_operand.hbm [shape: f32[128,128], index: 1, kind: input, shape index: {}]
  %s2 = inlined_call_operand.hbm [shape: f32[128,128], index: 2, kind: input, shape index: {}]
  %s3 = inlined_call_operand.vmem [shape: f32[1,128], index: 3, kind: input, shape index: {}]
  %s4 = inlined_call_operand.vmem [shape: f32[1,128], index: 4, kind: input, shape index: {}]
  %s5 = inlined_call_operand.hbm [shape: f32[1,128], index: 5, kind: output, shape index: {}]
  %s6 = sld [smem:[#allocation0]]
  $region42: #{tpu_custom_call.1} parent=0
    _
  %s8 = ssub.s32 1, %s6
  %s9 = scalar_select 0, %s8, %s6
  $region1: #{tpu_custom_call.1} parent=0
    #allocation3 [shape = 'u8[524288]{0}', space=vmem, size = 0x80000, scoped, tag = 'input window, operand 0, single buffered']
    #allocation4 [shape = 's32[1]{0}', space=sflag, size = 0x4, scoped, tag = 'scoped memory for tpu_custom_call.1']
    #allocation5 [shape = 's32[1]{0}', space=sflag, size = 0x4, scoped, tag = 'scoped memory for tpu_custom_call.1']
    #allocation6 [shape = 'u8[65536]{0}', space=vmem, size = 0x10000, scoped, tag = 'input window, operand 1, single buffered']
    #allocation7 [shape = 's32[1]{0}', space=sflag, size = 0x4, scoped, tag = 'scoped memory for tpu_custom_call.1']
    #allocation8 [shape = 'u8[65536]{0}', space=vmem, size = 0x10000, scoped, tag = 'input window, operand 2, single buffered']
    #allocation9 [shape = 'u8[512]{0}', space=vmem, size = 0x400, scoped, tag = 'output window, operand 0, single buffered']
    %10 = vsyncpa [#allocation4], 0
    %11 = vsyncpa [#allocation7], 0
    %12 = vsyncpa [#allocation5], 0
    // Predicated region
    $region2: #{tpu_custom_call.1} parent=1 // pred_check
      _
    $region3: #{tpu_custom_call.1} parent=1 // pred_check_branch
      %14 = sbr.rel (0) target = $region5
    $region4: #{tpu_custom_call.1} parent=1 // pred_region
      %16 = vsyncadd [#allocation4], 0
      %s17 = sshll.u32 %s0, 4
      %s18 = int_to_ptr.hbm [resolvable:$true] %s17
      %s19 = sshll.u32 [#allocation3], 4
      %s20 = int_to_ptr.vmem [resolvable:$true] %s19
      %25 = dma.hbm_to_vmem [thread:$0]  %s18, 16384, %s20, [#allocation4], 128, 128, 8
    $region5: #{tpu_custom_call.1} parent=1 // pred_fallthru
      _
    // Predicated region
    $region6: #{tpu_custom_call.1} parent=1 // pred_check
      _
    $region7: #{tpu_custom_call.1} parent=1 // pred_check_branch
      %27 = sbr.rel (0) target = $region9
    $region8: #{tpu_custom_call.1} parent=1 // pred_region
      %29 = vsyncadd [#allocation7], 0
      %s30 = sshll.u32 %s1, 4
      %s31 = int_to_ptr.hbm [resolvable:$true] %s30
      %s32 = sshll.u32 [#allocation6], 4
      %s33 = int_to_ptr.vmem [resolvable:$true] %s32
      %38 = dma.hbm_to_vmem [thread:$0]  %s31, 2048, %s33, [#allocation7], 128, 128, 8
    $region9: #{tpu_custom_call.1} parent=1 // pred_fallthru
      _
    // Predicated region
    $region10: #{tpu_custom_call.1} parent=1 // pred_check
      _
    $region11: #{tpu_custom_call.1} parent=1 // pred_check_branch
      %40 = sbr.rel (0) target = $region13
    $region12: #{tpu_custom_call.1} parent=1 // pred_region
      %42 = vsyncadd [#allocation7], 0
      %s43 = sshll.u32 %s2, 4
      %s44 = int_to_ptr.hbm [resolvable:$true] %s43
      %s45 = sshll.u32 [#allocation8], 4
      %s46 = int_to_ptr.vmem [resolvable:$true] %s45
      %51 = dma.hbm_to_vmem [thread:$0]  %s44, 2048, %s46, [#allocation7], 128, 128, 8
    $region13: #{tpu_custom_call.1} parent=1 // pred_fallthru
      _
    // Predicated region
    $region14: #{tpu_custom_call.1} parent=1 // pred_check
      _
    $region15: #{tpu_custom_call.1} parent=1 // pred_check_branch
      %53 = sbr.rel (0) target = $region17
    $region16: #{tpu_custom_call.1} parent=1 // pred_region
      _
    $region17: #{tpu_custom_call.1} parent=1 // pred_fallthru
      _
    // Predicated region
    $region18: #{tpu_custom_call.1} parent=1 // pred_check
      _
    $region19: #{tpu_custom_call.1} parent=1 // pred_check_branch
      %55 = sbr.rel (0) target = $region21
    $region20: #{tpu_custom_call.1} parent=1 // pred_region
      _
    $region21: #{tpu_custom_call.1} parent=1 // pred_fallthru
      _
    // Predicated region
    $region22: #{tpu_custom_call.1} parent=1 // pred_check
      _
    $region23: #{tpu_custom_call.1} parent=1 // pred_check_branch
      %57 = sbr.rel (0) target = $region25
    $region24: #{tpu_custom_call.1} parent=1 // pred_region
      %59 = dma.done [#allocation4], 16384
    $region25: #{tpu_custom_call.1} parent=1 // pred_fallthru
      _
    // Predicated region
    $region26: #{tpu_custom_call.1} parent=1 // pred_check
      _
    $region27: #{tpu_custom_call.1} parent=1 // pred_check_branch
      %61 = sbr.rel (0) target = $region29
    $region28: #{tpu_custom_call.1} parent=1 // pred_region
      %63 = dma.done [#allocation7], 2048
    $region29: #{tpu_custom_call.1} parent=1 // pred_fallthru
      _
    // Predicated region
    $region30: #{tpu_custom_call.1} parent=1 // pred_check
      _
    $region31: #{tpu_custom_call.1} parent=1 // pred_check_branch
      %65 = sbr.rel (0) target = $region33
    $region32: #{tpu_custom_call.1} parent=1 // pred_region
      %67 = dma.done [#allocation7], 2048
    $region33: #{tpu_custom_call.1} parent=1 // pred_fallthru
      _
    %v68 = vld [vmem:[#allocation3] sm:$0xff]
    %v69 = vld [vmem:[#allocation3 + $0x8] sm:$0xff]
    %v70 = vld [vmem:[#allocation3 + $0x10] sm:$0xff]
    %v71 = vld [vmem:[#allocation3 + $0x18] sm:$0xff]
    %v72 = vld [vmem:[#allocation3 + $0x20] sm:$0xff]
    %v73 = vld [vmem:[#allocation3 + $0x28] sm:$0xff]
    %v74 = vld [vmem:[#allocation3 + $0x30] sm:$0xff]
    %v75 = vld [vmem:[#allocation3 + $0x38] sm:$0xff]
    %v76 = vld [vmem:[#allocation3 + $0x40] sm:$0xff]
    %v77 = vld [vmem:[#allocation3 + $0x48] sm:$0xff]
    %v78 = vld [vmem:[#allocation3 + $0x50] sm:$0xff]
    %v79 = vld [vmem:[#allocation3 + $0x58] sm:$0xff]
    %v80 = vld [vmem:[#allocation3 + $0x60] sm:$0xff]
    %v81 = vld [vmem:[#allocation3 + $0x68] sm:$0xff]
    %v82 = vld [vmem:[#allocation3 + $0x70] sm:$0xff]
    %v83 = vld [vmem:[#allocation3 + $0x78] sm:$0xff]
    %v84 = vld [vmem:[#allocation3 + $0x80] sm:$0xff]
    %v85 = vld [vmem:[#allocation3 + $0x88] sm:$0xff]
    %v86 = vld [vmem:[#allocation3 + $0x90] sm:$0xff]
    %v87 = vld [vmem:[#allocation3 + $0x98] sm:$0xff]
    %v88 = vld [vmem:[#allocation3 + $0xa0] sm:$0xff]
    %v89 = vld [vmem:[#allocation3 + $0xa8] sm:$0xff]
    %v90 = vld [vmem:[#allocation3 + $0xb0] sm:$0xff]
    %v91 = vld [vmem:[#allocation3 + $0xb8] sm:$0xff]
    %v92 = vld [vmem:[#allocation3 + $0xc0] sm:$0xff]
    %v93 = vld [vmem:[#allocation3 + $0xc8] sm:$0xff]
    %v94 = vld [vmem:[#allocation3 + $0xd0] sm:$0xff]
    %v95 = vld [vmem:[#allocation3 + $0xd8] sm:$0xff]
    %v96 = vld [vmem:[#allocation3 + $0xe0] sm:$0xff]
    %v97 = vld [vmem:[#allocation3 + $0xe8] sm:$0xff]
    %v98 = vld [vmem:[#allocation3 + $0xf0] sm:$0xff]
    %v99 = vld [vmem:[#allocation3 + $0xf8] sm:$0xff]
    %v100 = vld [vmem:[#allocation3 + $0x100] sm:$0xff]
    %v101 = vld [vmem:[#allocation3 + $0x108] sm:$0xff]
    %v102 = vld [vmem:[#allocation3 + $0x110] sm:$0xff]
    %v103 = vld [vmem:[#allocation3 + $0x118] sm:$0xff]
    %v104 = vld [vmem:[#allocation3 + $0x120] sm:$0xff]
    %v105 = vld [vmem:[#allocation3 + $0x128] sm:$0xff]
    %v106 = vld [vmem:[#allocation3 + $0x130] sm:$0xff]
    %v107 = vld [vmem:[#allocation3 + $0x138] sm:$0xff]
    %v108 = vld [vmem:[#allocation3 + $0x140] sm:$0xff]
    %v109 = vld [vmem:[#allocation3 + $0x148] sm:$0xff]
    %v110 = vld [vmem:[#allocation3 + $0x150] sm:$0xff]
    %v111 = vld [vmem:[#allocation3 + $0x158] sm:$0xff]
    %v112 = vld [vmem:[#allocation3 + $0x160] sm:$0xff]
    %v113 = vld [vmem:[#allocation3 + $0x168] sm:$0xff]
    %v114 = vld [vmem:[#allocation3 + $0x170] sm:$0xff]
    %v115 = vld [vmem:[#allocation3 + $0x178] sm:$0xff]
    %v116 = vld [vmem:[#allocation3 + $0x180] sm:$0xff]
    %v117 = vld [vmem:[#allocation3 + $0x188] sm:$0xff]
    %v118 = vld [vmem:[#allocation3 + $0x190] sm:$0xff]
    %v119 = vld [vmem:[#allocation3 + $0x198] sm:$0xff]
    %v120 = vld [vmem:[#allocation3 + $0x1a0] sm:$0xff]
    %v121 = vld [vmem:[#allocation3 + $0x1a8] sm:$0xff]
    %v122 = vld [vmem:[#allocation3 + $0x1b0] sm:$0xff]
    %v123 = vld [vmem:[#allocation3 + $0x1b8] sm:$0xff]
    %v124 = vld [vmem:[#allocation3 + $0x1c0] sm:$0xff]
    %v125 = vld [vmem:[#allocation3 + $0x1c8] sm:$0xff]
    %v126 = vld [vmem:[#allocation3 + $0x1d0] sm:$0xff]
    %v127 = vld [vmem:[#allocation3 + $0x1d8] sm:$0xff]
    %v128 = vld [vmem:[#allocation3 + $0x1e0] sm:$0xff]
    %v129 = vld [vmem:[#allocation3 + $0x1e8] sm:$0xff]
    %v130 = vld [vmem:[#allocation3 + $0x1f0] sm:$0xff]
    %v131 = vld [vmem:[#allocation3 + $0x1f8] sm:$0xff]
    %v132 = vld [vmem:[#allocation3 + $0x200] sm:$0xff]
    %v133 = vld [vmem:[#allocation3 + $0x208] sm:$0xff]
    %v134 = vld [vmem:[#allocation3 + $0x210] sm:$0xff]
    %v135 = vld [vmem:[#allocation3 + $0x218] sm:$0xff]
    %v136 = vld [vmem:[#allocation3 + $0x220] sm:$0xff]
    %v137 = vld [vmem:[#allocation3 + $0x228] sm:$0xff]
    %v138 = vld [vmem:[#allocation3 + $0x230] sm:$0xff]
    %v139 = vld [vmem:[#allocation3 + $0x238] sm:$0xff]
    %v140 = vld [vmem:[#allocation3 + $0x240] sm:$0xff]
    %v141 = vld [vmem:[#allocation3 + $0x248] sm:$0xff]
    %v142 = vld [vmem:[#allocation3 + $0x250] sm:$0xff]
    %v143 = vld [vmem:[#allocation3 + $0x258] sm:$0xff]
    %v144 = vld [vmem:[#allocation3 + $0x260] sm:$0xff]
    %v145 = vld [vmem:[#allocation3 + $0x268] sm:$0xff]
    %v146 = vld [vmem:[#allocation3 + $0x270] sm:$0xff]
    %v147 = vld [vmem:[#allocation3 + $0x278] sm:$0xff]
    %v148 = vld [vmem:[#allocation3 + $0x280] sm:$0xff]
    %v149 = vld [vmem:[#allocation3 + $0x288] sm:$0xff]
    %v150 = vld [vmem:[#allocation3 + $0x290] sm:$0xff]
    %v151 = vld [vmem:[#allocation3 + $0x298] sm:$0xff]
    %v152 = vld [vmem:[#allocation3 + $0x2a0] sm:$0xff]
    %v153 = vld [vmem:[#allocation3 + $0x2a8] sm:$0xff]
    %v154 = vld [vmem:[#allocation3 + $0x2b0] sm:$0xff]
    %v155 = vld [vmem:[#allocation3 + $0x2b8] sm:$0xff]
    %v156 = vld [vmem:[#allocation3 + $0x2c0] sm:$0xff]
    %v157 = vld [vmem:[#allocation3 + $0x2c8] sm:$0xff]
    %v158 = vld [vmem:[#allocation3 + $0x2d0] sm:$0xff]
    %v159 = vld [vmem:[#allocation3 + $0x2d8] sm:$0xff]
    %v160 = vld [vmem:[#allocation3 + $0x2e0] sm:$0xff]
    %v161 = vld [vmem:[#allocation3 + $0x2e8] sm:$0xff]
    %v162 = vld [vmem:[#allocation3 + $0x2f0] sm:$0xff]
    %v163 = vld [vmem:[#allocation3 + $0x2f8] sm:$0xff]
    %v164 = vld [vmem:[#allocation3 + $0x300] sm:$0xff]
    %v165 = vld [vmem:[#allocation3 + $0x308] sm:$0xff]
    %v166 = vld [vmem:[#allocation3 + $0x310] sm:$0xff]
    %v167 = vld [vmem:[#allocation3 + $0x318] sm:$0xff]
    %v168 = vld [vmem:[#allocation3 + $0x320] sm:$0xff]
    %v169 = vld [vmem:[#allocation3 + $0x328] sm:$0xff]
    %v170 = vld [vmem:[#allocation3 + $0x330] sm:$0xff]
    %v171 = vld [vmem:[#allocation3 + $0x338] sm:$0xff]
    %v172 = vld [vmem:[#allocation3 + $0x340] sm:$0xff]
    %v173 = vld [vmem:[#allocation3 + $0x348] sm:$0xff]
    %v174 = vld [vmem:[#allocation3 + $0x350] sm:$0xff]
    %v175 = vld [vmem:[#allocation3 + $0x358] sm:$0xff]
    %v176 = vld [vmem:[#allocation3 + $0x360] sm:$0xff]
    %v177 = vld [vmem:[#allocation3 + $0x368] sm:$0xff]
    %v178 = vld [vmem:[#allocation3 + $0x370] sm:$0xff]
    %v179 = vld [vmem:[#allocation3 + $0x378] sm:$0xff]
    %v180 = vld [vmem:[#allocation3 + $0x380] sm:$0xff]
    %v181 = vld [vmem:[#allocation3 + $0x388] sm:$0xff]
    %v182 = vld [vmem:[#allocation3 + $0x390] sm:$0xff]
    %v183 = vld [vmem:[#allocation3 + $0x398] sm:$0xff]
    %v184 = vld [vmem:[#allocation3 + $0x3a0] sm:$0xff]
    %v185 = vld [vmem:[#allocation3 + $0x3a8] sm:$0xff]
    %v186 = vld [vmem:[#allocation3 + $0x3b0] sm:$0xff]
    %v187 = vld [vmem:[#allocation3 + $0x3b8] sm:$0xff]
    %v188 = vld [vmem:[#allocation3 + $0x3c0] sm:$0xff]
    %v189 = vld [vmem:[#allocation3 + $0x3c8] sm:$0xff]
    %v190 = vld [vmem:[#allocation3 + $0x3d0] sm:$0xff]
    %v191 = vld [vmem:[#allocation3 + $0x3d8] sm:$0xff]
    %v192 = vld [vmem:[#allocation3 + $0x3e0] sm:$0xff]
    %v193 = vld [vmem:[#allocation3 + $0x3e8] sm:$0xff]
    %v194 = vld [vmem:[#allocation3 + $0x3f0] sm:$0xff]
    %v195 = vld [vmem:[#allocation3 + $0x3f8] sm:$0xff]
    %v196 = vld [vmem:[#allocation6] sm:$0xff]
    %v197 = vld [vmem:[#allocation6 + $0x8] sm:$0xff]
    %v198 = vld [vmem:[#allocation6 + $0x10] sm:$0xff]
    %v199 = vld [vmem:[#allocation6 + $0x18] sm:$0xff]
    %v200 = vld [vmem:[#allocation6 + $0x20] sm:$0xff]
    %v201 = vld [vmem:[#allocation6 + $0x28] sm:$0xff]
    %v202 = vld [vmem:[#allocation6 + $0x30] sm:$0xff]
    %v203 = vld [vmem:[#allocation6 + $0x38] sm:$0xff]
    %v204 = vld [vmem:[#allocation6 + $0x40] sm:$0xff]
    %v205 = vld [vmem:[#allocation6 + $0x48] sm:$0xff]
    %v206 = vld [vmem:[#allocation6 + $0x50] sm:$0xff]
    %v207 = vld [vmem:[#allocation6 + $0x58] sm:$0xff]
    %v208 = vld [vmem:[#allocation6 + $0x60] sm:$0xff]
    %v209 = vld [vmem:[#allocation6 + $0x68] sm:$0xff]
    %v210 = vld [vmem:[#allocation6 + $0x70] sm:$0xff]
    %v211 = vld [vmem:[#allocation6 + $0x78] sm:$0xff]
    %212 = vmatpush.msra.mxu0 %v211
    %213 = vmatpush.msra.mxu0 %v210
    %214 = vmatpush.msra.mxu0 %v209
    %215 = vmatpush.msra.mxu0 %v208
    %216 = vmatpush.msra.mxu0 %v207
    %217 = vmatpush.msra.mxu0 %v206
    %218 = vmatpush.msra.mxu0 %v205
    %219 = vmatpush.msra.mxu0 %v204
    %220 = vmatpush.msra.mxu0 %v203
    %221 = vmatpush.msra.mxu0 %v202
    %222 = vmatpush.msra.mxu0 %v201
    %223 = vmatpush.msra.mxu0 %v200
    %224 = vmatpush.msra.mxu0 %v199
    %225 = vmatpush.msra.mxu0 %v198
    %226 = vmatpush.msra.mxu0 %v197
    %227 = vmatpush.msra.mxu0 %v196
    %228 = vmatmul.f32.gmra.mxu0 %v68
    %v229 = vpop.f32.mrf.mxu0
    %v230 = vadd.f32 0.0, %v229
    %231 = vmatmul.f32.gmra.mxu0 %v69
    %v232 = vpop.f32.mrf.mxu0
    %v233 = vadd.f32 0.0, %v232
    %234 = vmatmul.f32.gmra.mxu0 %v70
    %v235 = vpop.f32.mrf.mxu0
    %v236 = vadd.f32 0.0, %v235
    %237 = vmatmul.f32.gmra.mxu0 %v71
    %v238 = vpop.f32.mrf.mxu0
    %v239 = vadd.f32 0.0, %v238
    %240 = vmatmul.f32.gmra.mxu0 %v72
    %v241 = vpop.f32.mrf.mxu0
    %v242 = vadd.f32 0.0, %v241
    %243 = vmatmul.f32.gmra.mxu0 %v73
    %v244 = vpop.f32.mrf.mxu0
    %v245 = vadd.f32 0.0, %v244
    %246 = vmatmul.f32.gmra.mxu0 %v74
    %v247 = vpop.f32.mrf.mxu0
    %v248 = vadd.f32 0.0, %v247
    %249 = vmatmul.f32.gmra.mxu0 %v75
    %v250 = vpop.f32.mrf.mxu0
    %v251 = vadd.f32 0.0, %v250
    %252 = vmatmul.f32.gmra.mxu0 %v76
    %v253 = vpop.f32.mrf.mxu0
    %v254 = vadd.f32 0.0, %v253
    %255 = vmatmul.f32.gmra.mxu0 %v77
    %v256 = vpop.f32.mrf.mxu0
    %v257 = vadd.f32 0.0, %v256
    %258 = vmatmul.f32.gmra.mxu0 %v78
    %v259 = vpop.f32.mrf.mxu0
    %v260 = vadd.f32 0.0, %v259
    %261 = vmatmul.f32.gmra.mxu0 %v79
    %v262 = vpop.f32.mrf.mxu0
    %v263 = vadd.f32 0.0, %v262
    %264 = vmatmul.f32.gmra.mxu0 %v80
    %v265 = vpop.f32.mrf.mxu0
    %v266 = vadd.f32 0.0, %v265
    %267 = vmatmul.f32.gmra.mxu0 %v81
    %v268 = vpop.f32.mrf.mxu0
    %v269 = vadd.f32 0.0, %v268
    %270 = vmatmul.f32.gmra.mxu0 %v82
    %v271 = vpop.f32.mrf.mxu0
    %v272 = vadd.f32 0.0, %v271
    %273 = vmatmul.f32.gmra.mxu0 %v83
    %v274 = vpop.f32.mrf.mxu0
    %v275 = vadd.f32 0.0, %v274
    %276 = vmatmul.f32.gmra.mxu0 %v84
    %v277 = vpop.f32.mrf.mxu0
    %v278 = vadd.f32 0.0, %v277
    %279 = vmatmul.f32.gmra.mxu0 %v85
    %v280 = vpop.f32.mrf.mxu0
    %v281 = vadd.f32 0.0, %v280
    %282 = vmatmul.f32.gmra.mxu0 %v86
    %v283 = vpop.f32.mrf.mxu0
    %v284 = vadd.f32 0.0, %v283
    %285 = vmatmul.f32.gmra.mxu0 %v87
    %v286 = vpop.f32.mrf.mxu0
    %v287 = vadd.f32 0.0, %v286
    %288 = vmatmul.f32.gmra.mxu0 %v88
    %v289 = vpop.f32.mrf.mxu0
    %v290 = vadd.f32 0.0, %v289
    %291 = vmatmul.f32.gmra.mxu0 %v89
    %v292 = vpop.f32.mrf.mxu0
    %v293 = vadd.f32 0.0, %v292
    %294 = vmatmul.f32.gmra.mxu0 %v90
    %v295 = vpop.f32.mrf.mxu0
    %v296 = vadd.f32 0.0, %v295
    %297 = vmatmul.f32.gmra.mxu0 %v91
    %v298 = vpop.f32.mrf.mxu0
    %v299 = vadd.f32 0.0, %v298
    %300 = vmatmul.f32.gmra.mxu0 %v92
    %v301 = vpop.f32.mrf.mxu0
    %v302 = vadd.f32 0.0, %v301
    %303 = vmatmul.f32.gmra.mxu0 %v93
    %v304 = vpop.f32.mrf.mxu0
    %v305 = vadd.f32 0.0, %v304
    %306 = vmatmul.f32.gmra.mxu0 %v94
    %v307 = vpop.f32.mrf.mxu0
    %v308 = vadd.f32 0.0, %v307
    %309 = vmatmul.f32.gmra.mxu0 %v95
    %v310 = vpop.f32.mrf.mxu0
    %v311 = vadd.f32 0.0, %v310
    %312 = vmatmul.f32.gmra.mxu0 %v96
    %v313 = vpop.f32.mrf.mxu0
    %v314 = vadd.f32 0.0, %v313
    %315 = vmatmul.f32.gmra.mxu0 %v97
    %v316 = vpop.f32.mrf.mxu0
    %v317 = vadd.f32 0.0, %v316
    %318 = vmatmul.f32.gmra.mxu0 %v98
    %v319 = vpop.f32.mrf.mxu0
    %v320 = vadd.f32 0.0, %v319
    %321 = vmatmul.f32.gmra.mxu0 %v99
    %v322 = vpop.f32.mrf.mxu0
    %v323 = vadd.f32 0.0, %v322
    %324 = vmatmul.f32.gmra.mxu0 %v100
    %v325 = vpop.f32.mrf.mxu0
    %v326 = vadd.f32 0.0, %v325
    %327 = vmatmul.f32.gmra.mxu0 %v101
    %v328 = vpop.f32.mrf.mxu0
    %v329 = vadd.f32 0.0, %v328
    %330 = vmatmul.f32.gmra.mxu0 %v102
    %v331 = vpop.f32.mrf.mxu0
    %v332 = vadd.f32 0.0, %v331
    %333 = vmatmul.f32.gmra.mxu0 %v103
    %v334 = vpop.f32.mrf.mxu0
    %v335 = vadd.f32 0.0, %v334
    %336 = vmatmul.f32.gmra.mxu0 %v104
    %v337 = vpop.f32.mrf.mxu0
    %v338 = vadd.f32 0.0, %v337
    %339 = vmatmul.f32.gmra.mxu0 %v105
    %v340 = vpop.f32.mrf.mxu0
    %v341 = vadd.f32 0.0, %v340
    %342 = vmatmul.f32.gmra.mxu0 %v106
    %v343 = vpop.f32.mrf.mxu0
    %v344 = vadd.f32 0.0, %v343
    %345 = vmatmul.f32.gmra.mxu0 %v107
    %v346 = vpop.f32.mrf.mxu0
    %v347 = vadd.f32 0.0, %v346
    %348 = vmatmul.f32.gmra.mxu0 %v108
    %v349 = vpop.f32.mrf.mxu0
    %v350 = vadd.f32 0.0, %v349
    %351 = vmatmul.f32.gmra.mxu0 %v109
    %v352 = vpop.f32.mrf.mxu0
    %v353 = vadd.f32 0.0, %v352
    %354 = vmatmul.f32.gmra.mxu0 %v110
    %v355 = vpop.f32.mrf.mxu0
    %v356 = vadd.f32 0.0, %v355
    %357 = vmatmul.f32.gmra.mxu0 %v111
    %v358 = vpop.f32.mrf.mxu0
    %v359 = vadd.f32 0.0, %v358
    %360 = vmatmul.f32.gmra.mxu0 %v112
    %v361 = vpop.f32.mrf.mxu0
    %v362 = vadd.f32 0.0, %v361
    %363 = vmatmul.f32.gmra.mxu0 %v113
    %v364 = vpop.f32.mrf.mxu0
    %v365 = vadd.f32 0.0, %v364
    %366 = vmatmul.f32.gmra.mxu0 %v114
    %v367 = vpop.f32.mrf.mxu0
    %v368 = vadd.f32 0.0, %v367
    %369 = vmatmul.f32.gmra.mxu0 %v115
    %v370 = vpop.f32.mrf.mxu0
    %v371 = vadd.f32 0.0, %v370
    %372 = vmatmul.f32.gmra.mxu0 %v116
    %v373 = vpop.f32.mrf.mxu0
    %v374 = vadd.f32 0.0, %v373
    %375 = vmatmul.f32.gmra.mxu0 %v117
    %v376 = vpop.f32.mrf.mxu0
    %v377 = vadd.f32 0.0, %v376
    %378 = vmatmul.f32.gmra.mxu0 %v118
    %v379 = vpop.f32.mrf.mxu0
    %v380 = vadd.f32 0.0, %v379
    %381 = vmatmul.f32.gmra.mxu0 %v119
    %v382 = vpop.f32.mrf.mxu0
    %v383 = vadd.f32 0.0, %v382
    %384 = vmatmul.f32.gmra.mxu0 %v120
    %v385 = vpop.f32.mrf.mxu0
    %v386 = vadd.f32 0.0, %v385
    %387 = vmatmul.f32.gmra.mxu0 %v121
    %v388 = vpop.f32.mrf.mxu0
    %v389 = vadd.f32 0.0, %v388
    %390 = vmatmul.f32.gmra.mxu0 %v122
    %v391 = vpop.f32.mrf.mxu0
    %v392 = vadd.f32 0.0, %v391
    %393 = vmatmul.f32.gmra.mxu0 %v123
    %v394 = vpop.f32.mrf.mxu0
    %v395 = vadd.f32 0.0, %v394
    %396 = vmatmul.f32.gmra.mxu0 %v124
    %v397 = vpop.f32.mrf.mxu0
    %v398 = vadd.f32 0.0, %v397
    %399 = vmatmul.f32.gmra.mxu0 %v125
    %v400 = vpop.f32.mrf.mxu0
    %v401 = vadd.f32 0.0, %v400
    %402 = vmatmul.f32.gmra.mxu0 %v126
    %v403 = vpop.f32.mrf.mxu0
    %v404 = vadd.f32 0.0, %v403
    %405 = vmatmul.f32.gmra.mxu0 %v127
    %v406 = vpop.f32.mrf.mxu0
    %v407 = vadd.f32 0.0, %v406
    %408 = vmatmul.f32.gmra.mxu0 %v128
    %v409 = vpop.f32.mrf.mxu0
    %v410 = vadd.f32 0.0, %v409
    %411 = vmatmul.f32.gmra.mxu0 %v129
    %v412 = vpop.f32.mrf.mxu0
    %v413 = vadd.f32 0.0, %v412
    %414 = vmatmul.f32.gmra.mxu0 %v130
    %v415 = vpop.f32.mrf.mxu0
    %v416 = vadd.f32 0.0, %v415
    %417 = vmatmul.f32.gmra.mxu0 %v131
    %v418 = vpop.f32.mrf.mxu0
    %v419 = vadd.f32 0.0, %v418
    %420 = vmatmul.f32.gmra.mxu0 %v132
    %v421 = vpop.f32.mrf.mxu0
    %v422 = vadd.f32 0.0, %v421
    %423 = vmatmul.f32.gmra.mxu0 %v133
    %v424 = vpop.f32.mrf.mxu0
    %v425 = vadd.f32 0.0, %v424
    %426 = vmatmul.f32.gmra.mxu0 %v134
    %v427 = vpop.f32.mrf.mxu0
    %v428 = vadd.f32 0.0, %v427
    %429 = vmatmul.f32.gmra.mxu0 %v135
    %v430 = vpop.f32.mrf.mxu0
    %v431 = vadd.f32 0.0, %v430
    %432 = vmatmul.f32.gmra.mxu0 %v136
    %v433 = vpop.f32.mrf.mxu0
    %v434 = vadd.f32 0.0, %v433
    %435 = vmatmul.f32.gmra.mxu0 %v137
    %v436 = vpop.f32.mrf.mxu0
    %v437 = vadd.f32 0.0, %v436
    %438 = vmatmul.f32.gmra.mxu0 %v138
    %v439 = vpop.f32.mrf.mxu0
    %v440 = vadd.f32 0.0, %v439
    %441 = vmatmul.f32.gmra.mxu0 %v139
    %v442 = vpop.f32.mrf.mxu0
    %v443 = vadd.f32 0.0, %v442
    %444 = vmatmul.f32.gmra.mxu0 %v140
    %v445 = vpop.f32.mrf.mxu0
    %v446 = vadd.f32 0.0, %v445
    %447 = vmatmul.f32.gmra.mxu0 %v141
    %v448 = vpop.f32.mrf.mxu0
    %v449 = vadd.f32 0.0, %v448
    %450 = vmatmul.f32.gmra.mxu0 %v142
    %v451 = vpop.f32.mrf.mxu0
    %v452 = vadd.f32 0.0, %v451
    %453 = vmatmul.f32.gmra.mxu0 %v143
    %v454 = vpop.f32.mrf.mxu0
    %v455 = vadd.f32 0.0, %v454
    %456 = vmatmul.f32.gmra.mxu0 %v144
    %v457 = vpop.f32.mrf.mxu0
    %v458 = vadd.f32 0.0, %v457
    %459 = vmatmul.f32.gmra.mxu0 %v145
    %v460 = vpop.f32.mrf.mxu0
    %v461 = vadd.f32 0.0, %v460
    %462 = vmatmul.f32.gmra.mxu0 %v146
    %v463 = vpop.f32.mrf.mxu0
    %v464 = vadd.f32 0.0, %v463
    %465 = vmatmul.f32.gmra.mxu0 %v147
    %v466 = vpop.f32.mrf.mxu0
    %v467 = vadd.f32 0.0, %v466
    %468 = vmatmul.f32.gmra.mxu0 %v148
    %v469 = vpop.f32.mrf.mxu0
    %v470 = vadd.f32 0.0, %v469
    %471 = vmatmul.f32.gmra.mxu0 %v149
    %v472 = vpop.f32.mrf.mxu0
    %v473 = vadd.f32 0.0, %v472
    %474 = vmatmul.f32.gmra.mxu0 %v150
    %v475 = vpop.f32.mrf.mxu0
    %v476 = vadd.f32 0.0, %v475
    %477 = vmatmul.f32.gmra.mxu0 %v151
    %v478 = vpop.f32.mrf.mxu0
    %v479 = vadd.f32 0.0, %v478
    %480 = vmatmul.f32.gmra.mxu0 %v152
    %v481 = vpop.f32.mrf.mxu0
    %v482 = vadd.f32 0.0, %v481
    %483 = vmatmul.f32.gmra.mxu0 %v153
    %v484 = vpop.f32.mrf.mxu0
    %v485 = vadd.f32 0.0, %v484
    %486 = vmatmul.f32.gmra.mxu0 %v154
    %v487 = vpop.f32.mrf.mxu0
    %v488 = vadd.f32 0.0, %v487
    %489 = vmatmul.f32.gmra.mxu0 %v155
    %v490 = vpop.f32.mrf.mxu0
    %v491 = vadd.f32 0.0, %v490
    %492 = vmatmul.f32.gmra.mxu0 %v156
    %v493 = vpop.f32.mrf.mxu0
    %v494 = vadd.f32 0.0, %v493
    %495 = vmatmul.f32.gmra.mxu0 %v157
    %v496 = vpop.f32.mrf.mxu0
    %v497 = vadd.f32 0.0, %v496
    %498 = vmatmul.f32.gmra.mxu0 %v158
    %v499 = vpop.f32.mrf.mxu0
    %v500 = vadd.f32 0.0, %v499
    %501 = vmatmul.f32.gmra.mxu0 %v159
    %v502 = vpop.f32.mrf.mxu0
    %v503 = vadd.f32 0.0, %v502
    %504 = vmatmul.f32.gmra.mxu0 %v160
    %v505 = vpop.f32.mrf.mxu0
    %v506 = vadd.f32 0.0, %v505
    %507 = vmatmul.f32.gmra.mxu0 %v161
    %v508 = vpop.f32.mrf.mxu0
    %v509 = vadd.f32 0.0, %v508
    %510 = vmatmul.f32.gmra.mxu0 %v162
    %v511 = vpop.f32.mrf.mxu0
    %v512 = vadd.f32 0.0, %v511
    %513 = vmatmul.f32.gmra.mxu0 %v163
    %v514 = vpop.f32.mrf.mxu0
    %v515 = vadd.f32 0.0, %v514
    %516 = vmatmul.f32.gmra.mxu0 %v164
    %v517 = vpop.f32.mrf.mxu0
    %v518 = vadd.f32 0.0, %v517
    %519 = vmatmul.f32.gmra.mxu0 %v165
    %v520 = vpop.f32.mrf.mxu0
    %v521 = vadd.f32 0.0, %v520
    %522 = vmatmul.f32.gmra.mxu0 %v166
    %v523 = vpop.f32.mrf.mxu0
    %v524 = vadd.f32 0.0, %v523
    %525 = vmatmul.f32.gmra.mxu0 %v167
    %v526 = vpop.f32.mrf.mxu0
    %v527 = vadd.f32 0.0, %v526
    %528 = vmatmul.f32.gmra.mxu0 %v168
    %v529 = vpop.f32.mrf.mxu0
    %v530 = vadd.f32 0.0, %v529
    %531 = vmatmul.f32.gmra.mxu0 %v169
    %v532 = vpop.f32.mrf.mxu0
    %v533 = vadd.f32 0.0, %v532
    %534 = vmatmul.f32.gmra.mxu0 %v170
    %v535 = vpop.f32.mrf.mxu0
    %v536 = vadd.f32 0.0, %v535
    %537 = vmatmul.f32.gmra.mxu0 %v171
    %v538 = vpop.f32.mrf.mxu0
    %v539 = vadd.f32 0.0, %v538
    %540 = vmatmul.f32.gmra.mxu0 %v172
    %v541 = vpop.f32.mrf.mxu0
    %v542 = vadd.f32 0.0, %v541
    %543 = vmatmul.f32.gmra.mxu0 %v173
    %v544 = vpop.f32.mrf.mxu0
    %v545 = vadd.f32 0.0, %v544
    %546 = vmatmul.f32.gmra.mxu0 %v174
    %v547 = vpop.f32.mrf.mxu0
    %v548 = vadd.f32 0.0, %v547
    %549 = vmatmul.f32.gmra.mxu0 %v175
    %v550 = vpop.f32.mrf.mxu0
    %v551 = vadd.f32 0.0, %v550
    %552 = vmatmul.f32.gmra.mxu0 %v176
    %v553 = vpop.f32.mrf.mxu0
    %v554 = vadd.f32 0.0, %v553
    %555 = vmatmul.f32.gmra.mxu0 %v177
    %v556 = vpop.f32.mrf.mxu0
    %v557 = vadd.f32 0.0, %v556
    %558 = vmatmul.f32.gmra.mxu0 %v178
    %v559 = vpop.f32.mrf.mxu0
    %v560 = vadd.f32 0.0, %v559
    %561 = vmatmul.f32.gmra.mxu0 %v179
    %v562 = vpop.f32.mrf.mxu0
    %v563 = vadd.f32 0.0, %v562
    %564 = vmatmul.f32.gmra.mxu0 %v180
    %v565 = vpop.f32.mrf.mxu0
    %v566 = vadd.f32 0.0, %v565
    %567 = vmatmul.f32.gmra.mxu0 %v181
    %v568 = vpop.f32.mrf.mxu0
    %v569 = vadd.f32 0.0, %v568
    %570 = vmatmul.f32.gmra.mxu0 %v182
    %v571 = vpop.f32.mrf.mxu0
    %v572 = vadd.f32 0.0, %v571
    %573 = vmatmul.f32.gmra.mxu0 %v183
    %v574 = vpop.f32.mrf.mxu0
    %v575 = vadd.f32 0.0, %v574
    %576 = vmatmul.f32.gmra.mxu0 %v184
    %v577 = vpop.f32.mrf.mxu0
    %v578 = vadd.f32 0.0, %v577
    %579 = vmatmul.f32.gmra.mxu0 %v185
    %v580 = vpop.f32.mrf.mxu0
    %v581 = vadd.f32 0.0, %v580
    %582 = vmatmul.f32.gmra.mxu0 %v186
    %v583 = vpop.f32.mrf.mxu0
    %v584 = vadd.f32 0.0, %v583
    %585 = vmatmul.f32.gmra.mxu0 %v187
    %v586 = vpop.f32.mrf.mxu0
    %v587 = vadd.f32 0.0, %v586
    %588 = vmatmul.f32.gmra.mxu0 %v188
    %v589 = vpop.f32.mrf.mxu0
    %v590 = vadd.f32 0.0, %v589
    %591 = vmatmul.f32.gmra.mxu0 %v189
    %v592 = vpop.f32.mrf.mxu0
    %v593 = vadd.f32 0.0, %v592
    %594 = vmatmul.f32.gmra.mxu0 %v190
    %v595 = vpop.f32.mrf.mxu0
    %v596 = vadd.f32 0.0, %v595
    %597 = vmatmul.f32.gmra.mxu0 %v191
    %v598 = vpop.f32.mrf.mxu0
    %v599 = vadd.f32 0.0, %v598
    %600 = vmatmul.f32.gmra.mxu0 %v192
    %v601 = vpop.f32.mrf.mxu0
    %v602 = vadd.f32 0.0, %v601
    %603 = vmatmul.f32.gmra.mxu0 %v193
    %v604 = vpop.f32.mrf.mxu0
    %v605 = vadd.f32 0.0, %v604
    %606 = vmatmul.f32.gmra.mxu0 %v194
    %v607 = vpop.f32.mrf.mxu0
    %v608 = vadd.f32 0.0, %v607
    %609 = vmatmul.f32.gmra.mxu0 %v195
    %v610 = vpop.f32.mrf.mxu0
    %v611 = vadd.f32 0.0, %v610
    %612 = vdwg.mxu0
    %613 = vst [vmem:[#allocation2] sm:$0xff] %v230
    %614 = vst [vmem:[#allocation2 + $0x8] sm:$0xff] %v233
    %615 = vst [vmem:[#allocation2 + $0x10] sm:$0xff] %v236
    %616 = vst [vmem:[#allocation2 + $0x18] sm:$0xff] %v239
    %617 = vst [vmem:[#allocation2 + $0x20] sm:$0xff] %v242
    %618 = vst [vmem:[#allocation2 + $0x28] sm:$0xff] %v245
    %619 = vst [vmem:[#allocation2 + $0x30] sm:$0xff] %v248
    %620 = vst [vmem:[#allocation2 + $0x38] sm:$0xff] %v251
    %621 = vst [vmem:[#allocation2 + $0x40] sm:$0xff] %v254
    %622 = vst [vmem:[#allocation2 + $0x48] sm:$0xff] %v257
    %623 = vst [vmem:[#allocation2 + $0x50] sm:$0xff] %v260
    %624 = vst [vmem:[#allocation2 + $0x58] sm:$0xff] %v263
    %625 = vst [vmem:[#allocation2 + $0x60] sm:$0xff] %v266
    %626 = vst [vmem:[#allocation2 + $0x68] sm:$0xff] %v269
    %627 = vst [vmem:[#allocation2 + $0x70] sm:$0xff] %v272
    %628 = vst [vmem:[#allocation2 + $0x78] sm:$0xff] %v275
    %629 = vst [vmem:[#allocation2 + $0x80] sm:$0xff] %v278
    %630 = vst [vmem:[#allocation2 + $0x88] sm:$0xff] %v281
    %631 = vst [vmem:[#allocation2 + $0x90] sm:$0xff] %v284
    %632 = vst [vmem:[#allocation2 + $0x98] sm:$0xff] %v287
    %633 = vst [vmem:[#allocation2 + $0xa0] sm:$0xff] %v290
    %634 = vst [vmem:[#allocation2 + $0xa8] sm:$0xff] %v293
    %635 = vst [vmem:[#allocation2 + $0xb0] sm:$0xff] %v296
    %636 = vst [vmem:[#allocation2 + $0xb8] sm:$0xff] %v299
    %637 = vst [vmem:[#allocation2 + $0xc0] sm:$0xff] %v302
    %638 = vst [vmem:[#allocation2 + $0xc8] sm:$0xff] %v305
    %639 = vst [vmem:[#allocation2 + $0xd0] sm:$0xff] %v308
    %640 = vst [vmem:[#allocation2 + $0xd8] sm:$0xff] %v311
    %641 = vst [vmem:[#allocation2 + $0xe0] sm:$0xff] %v314
    %642 = vst [vmem:[#allocation2 + $0xe8] sm:$0xff] %v317
    %643 = vst [vmem:[#allocation2 + $0xf0] sm:$0xff] %v320
    %644 = vst [vmem:[#allocation2 + $0xf8] sm:$0xff] %v323
    %645 = vst [vmem:[#allocation2 + $0x100] sm:$0xff] %v326
    %646 = vst [vmem:[#allocation2 + $0x108] sm:$0xff] %v329
    %647 = vst [vmem:[#allocation2 + $0x110] sm:$0xff] %v332
    %648 = vst [vmem:[#allocation2 + $0x118] sm:$0xff] %v335
    %649 = vst [vmem:[#allocation2 + $0x120] sm:$0xff] %v338
    %650 = vst [vmem:[#allocation2 + $0x128] sm:$0xff] %v341
    %651 = vst [vmem:[#allocation2 + $0x130] sm:$0xff] %v344
    %652 = vst [vmem:[#allocation2 + $0x138] sm:$0xff] %v347
    %653 = vst [vmem:[#allocation2 + $0x140] sm:$0xff] %v350
    %654 = vst [vmem:[#allocation2 + $0x148] sm:$0xff] %v353
    %655 = vst [vmem:[#allocation2 + $0x150] sm:$0xff] %v356
    %656 = vst [vmem:[#allocation2 + $0x158] sm:$0xff] %v359
    %657 = vst [vmem:[#allocation2 + $0x160] sm:$0xff] %v362
    %658 = vst [vmem:[#allocation2 + $0x168] sm:$0xff] %v365
    %659 = vst [vmem:[#allocation2 + $0x170] sm:$0xff] %v368
    %660 = vst [vmem:[#allocation2 + $0x178] sm:$0xff] %v371
    %661 = vst [vmem:[#allocation2 + $0x180] sm:$0xff] %v374
    %662 = vst [vmem:[#allocation2 + $0x188] sm:$0xff] %v377
    %663 = vst [vmem:[#allocation2 + $0x190] sm:$0xff] %v380
    %664 = vst [vmem:[#allocation2 + $0x198] sm:$0xff] %v383
    %665 = vst [vmem:[#allocation2 + $0x1a0] sm:$0xff] %v386
    %666 = vst [vmem:[#allocation2 + $0x1a8] sm:$0xff] %v389
    %667 = vst [vmem:[#allocation2 + $0x1b0] sm:$0xff] %v392
    %668 = vst [vmem:[#allocation2 + $0x1b8] sm:$0xff] %v395
    %669 = vst [vmem:[#allocation2 + $0x1c0] sm:$0xff] %v398
    %670 = vst [vmem:[#allocation2 + $0x1c8] sm:$0xff] %v401
    %671 = vst [vmem:[#allocation2 + $0x1d0] sm:$0xff] %v404
    %672 = vst [vmem:[#allocation2 + $0x1d8] sm:$0xff] %v407
    %673 = vst [vmem:[#allocation2 + $0x1e0] sm:$0xff] %v410
    %674 = vst [vmem:[#allocation2 + $0x1e8] sm:$0xff] %v413
    %675 = vst [vmem:[#allocation2 + $0x1f0] sm:$0xff] %v416
    %676 = vst [vmem:[#allocation2 + $0x1f8] sm:$0xff] %v419
    %677 = vst [vmem:[#allocation2 + $0x200] sm:$0xff] %v422
    %678 = vst [vmem:[#allocation2 + $0x208] sm:$0xff] %v425
    %679 = vst [vmem:[#allocation2 + $0x210] sm:$0xff] %v428
    %680 = vst [vmem:[#allocation2 + $0x218] sm:$0xff] %v431
    %681 = vst [vmem:[#allocation2 + $0x220] sm:$0xff] %v434
    %682 = vst [vmem:[#allocation2 + $0x228] sm:$0xff] %v437
    %683 = vst [vmem:[#allocation2 + $0x230] sm:$0xff] %v440
    %684 = vst [vmem:[#allocation2 + $0x238] sm:$0xff] %v443
    %685 = vst [vmem:[#allocation2 + $0x240] sm:$0xff] %v446
    %686 = vst [vmem:[#allocation2 + $0x248] sm:$0xff] %v449
    %687 = vst [vmem:[#allocation2 + $0x250] sm:$0xff] %v452
    %688 = vst [vmem:[#allocation2 + $0x258] sm:$0xff] %v455
    %689 = vst [vmem:[#allocation2 + $0x260] sm:$0xff] %v458
    %690 = vst [vmem:[#allocation2 + $0x268] sm:$0xff] %v461
    %691 = vst [vmem:[#allocation2 + $0x270] sm:$0xff] %v464
    %692 = vst [vmem:[#allocation2 + $0x278] sm:$0xff] %v467
    %693 = vst [vmem:[#allocation2 + $0x280] sm:$0xff] %v470
    %694 = vst [vmem:[#allocation2 + $0x288] sm:$0xff] %v473
    %695 = vst [vmem:[#allocation2 + $0x290] sm:$0xff] %v476
    %696 = vst [vmem:[#allocation2 + $0x298] sm:$0xff] %v479
    %697 = vst [vmem:[#allocation2 + $0x2a0] sm:$0xff] %v482
    %698 = vst [vmem:[#allocation2 + $0x2a8] sm:$0xff] %v485
    %699 = vst [vmem:[#allocation2 + $0x2b0] sm:$0xff] %v488
    %700 = vst [vmem:[#allocation2 + $0x2b8] sm:$0xff] %v491
    %701 = vst [vmem:[#allocation2 + $0x2c0] sm:$0xff] %v494
    %702 = vst [vmem:[#allocation2 + $0x2c8] sm:$0xff] %v497
    %703 = vst [vmem:[#allocation2 + $0x2d0] sm:$0xff] %v500
    %704 = vst [vmem:[#allocation2 + $0x2d8] sm:$0xff] %v503
    %705 = vst [vmem:[#allocation2 + $0x2e0] sm:$0xff] %v506
    %706 = vst [vmem:[#allocation2 + $0x2e8] sm:$0xff] %v509
    %707 = vst [vmem:[#allocation2 + $0x2f0] sm:$0xff] %v512
    %708 = vst [vmem:[#allocation2 + $0x2f8] sm:$0xff] %v515
    %709 = vst [vmem:[#allocation2 + $0x300] sm:$0xff] %v518
    %710 = vst [vmem:[#allocation2 + $0x308] sm:$0xff] %v521
    %711 = vst [vmem:[#allocation2 + $0x310] sm:$0xff] %v524
    %712 = vst [vmem:[#allocation2 + $0x318] sm:$0xff] %v527
    %713 = vst [vmem:[#allocation2 + $0x320] sm:$0xff] %v530
    %714 = vst [vmem:[#allocation2 + $0x328] sm:$0xff] %v533
    %715 = vst [vmem:[#allocation2 + $0x330] sm:$0xff] %v536
    %716 = vst [vmem:[#allocation2 + $0x338] sm:$0xff] %v539
    %717 = vst [vmem:[#allocation2 + $0x340] sm:$0xff] %v542
    %718 = vst [vmem:[#allocation2 + $0x348] sm:$0xff] %v545
    %719 = vst [vmem:[#allocation2 + $0x350] sm:$0xff] %v548
    %720 = vst [vmem:[#allocation2 + $0x358] sm:$0xff] %v551
    %721 = vst [vmem:[#allocation2 + $0x360] sm:$0xff] %v554
    %722 = vst [vmem:[#allocation2 + $0x368] sm:$0xff] %v557
    %723 = vst [vmem:[#allocation2 + $0x370] sm:$0xff] %v560
    %724 = vst [vmem:[#allocation2 + $0x378] sm:$0xff] %v563
    %725 = vst [vmem:[#allocation2 + $0x380] sm:$0xff] %v566
    %726 = vst [vmem:[#allocation2 + $0x388] sm:$0xff] %v569
    %727 = vst [vmem:[#allocation2 + $0x390] sm:$0xff] %v572
    %728 = vst [vmem:[#allocation2 + $0x398] sm:$0xff] %v575
    %729 = vst [vmem:[#allocation2 + $0x3a0] sm:$0xff] %v578
    %730 = vst [vmem:[#allocation2 + $0x3a8] sm:$0xff] %v581
    %731 = vst [vmem:[#allocation2 + $0x3b0] sm:$0xff] %v584
    %732 = vst [vmem:[#allocation2 + $0x3b8] sm:$0xff] %v587
    %733 = vst [vmem:[#allocation2 + $0x3c0] sm:$0xff] %v590
    %734 = vst [vmem:[#allocation2 + $0x3c8] sm:$0xff] %v593
    %735 = vst [vmem:[#allocation2 + $0x3d0] sm:$0xff] %v596
    %736 = vst [vmem:[#allocation2 + $0x3d8] sm:$0xff] %v599
    %737 = vst [vmem:[#allocation2 + $0x3e0] sm:$0xff] %v602
    %738 = vst [vmem:[#allocation2 + $0x3e8] sm:$0xff] %v605
    %739 = vst [vmem:[#allocation2 + $0x3f0] sm:$0xff] %v608
    %740 = vst [vmem:[#allocation2 + $0x3f8] sm:$0xff] %v611
    %v741 = vld [vmem:[#allocation8] sm:$0xff]
    %v742 = vld [vmem:[#allocation8 + $0x8] sm:$0xff]
    %v743 = vld [vmem:[#allocation8 + $0x10] sm:$0xff]
    %v744 = vld [vmem:[#allocation8 + $0x18] sm:$0xff]
    %v745 = vld [vmem:[#allocation8 + $0x20] sm:$0xff]
    %v746 = vld [vmem:[#allocation8 + $0x28] sm:$0xff]
    %v747 = vld [vmem:[#allocation8 + $0x30] sm:$0xff]
    %v748 = vld [vmem:[#allocation8 + $0x38] sm:$0xff]
    %v749 = vld [vmem:[#allocation8 + $0x40] sm:$0xff]
    %v750 = vld [vmem:[#allocation8 + $0x48] sm:$0xff]
    %v751 = vld [vmem:[#allocation8 + $0x50] sm:$0xff]
    %v752 = vld [vmem:[#allocation8 + $0x58] sm:$0xff]
    %v753 = vld [vmem:[#allocation8 + $0x60] sm:$0xff]
    %v754 = vld [vmem:[#allocation8 + $0x68] sm:$0xff]
    %v755 = vld [vmem:[#allocation8 + $0x70] sm:$0xff]
    %v756 = vld [vmem:[#allocation8 + $0x78] sm:$0xff]
    %v757 = vld [vmem:[%s3] sm:$0x1]
    %v758 = vld [vmem:[#allocation2] sm:$0xff]
    %v759 = vld [vmem:[#allocation2 + $0x8] sm:$0xff]
    %v760 = vld [vmem:[#allocation2 + $0x10] sm:$0xff]
    %v761 = vld [vmem:[#allocation2 + $0x18] sm:$0xff]
    %v762 = vld [vmem:[#allocation2 + $0x20] sm:$0xff]
    %v763 = vld [vmem:[#allocation2 + $0x28] sm:$0xff]
    %v764 = vld [vmem:[#allocation2 + $0x30] sm:$0xff]
    %v765 = vld [vmem:[#allocation2 + $0x38] sm:$0xff]
    %v766 = vld [vmem:[#allocation2 + $0x40] sm:$0xff]
    %v767 = vld [vmem:[#allocation2 + $0x48] sm:$0xff]
    %v768 = vld [vmem:[#allocation2 + $0x50] sm:$0xff]
    %v769 = vld [vmem:[#allocation2 + $0x58] sm:$0xff]
    %v770 = vld [vmem:[#allocation2 + $0x60] sm:$0xff]
    %v771 = vld [vmem:[#allocation2 + $0x68] sm:$0xff]
    %v772 = vld [vmem:[#allocation2 + $0x70] sm:$0xff]
    %v773 = vld [vmem:[#allocation2 + $0x78] sm:$0xff]
    %v774 = vld [vmem:[%s4] sm:$0x1]
    %v776 = vperm.slane %v774, 0
    %v778 = vadd.f32 %v758, %v776
    %v779 = vadd.f32 %v759, %v776
    %v780 = vadd.f32 %v760, %v776
    %v781 = vadd.f32 %v761, %v776
    %v782 = vadd.f32 %v762, %v776
    %v783 = vadd.f32 %v763, %v776
    %v784 = vadd.f32 %v764, %v776
    %v785 = vadd.f32 %v765, %v776
    %v786 = vadd.f32 %v766, %v776
    %v787 = vadd.f32 %v767, %v776
    %v788 = vadd.f32 %v768, %v776
    %v789 = vadd.f32 %v769, %v776
    %v790 = vadd.f32 %v770, %v776
    %v791 = vadd.f32 %v771, %v776
    %v792 = vadd.f32 %v772, %v776
    %v793 = vadd.f32 %v773, %v776
    %794 = vmax.xlane.f32.xlu0 %v778
    %v795 = vpop.xlane.xlu0 %794
    %796 = vmax.xlane.f32.xlu0 %v779
    %v797 = vpop.xlane.xlu0 %796
    %798 = vmax.xlane.f32.xlu0 %v780
    %v799 = vpop.xlane.xlu0 %798
    %800 = vmax.xlane.f32.xlu0 %v781
    %v801 = vpop.xlane.xlu0 %800
    %802 = vmax.xlane.f32.xlu0 %v782
    %v803 = vpop.xlane.xlu0 %802
    %804 = vmax.xlane.f32.xlu0 %v783
    %v805 = vpop.xlane.xlu0 %804
    %806 = vmax.xlane.f32.xlu0 %v784
    %v807 = vpop.xlane.xlu0 %806
    %808 = vmax.xlane.f32.xlu0 %v785
    %v809 = vpop.xlane.xlu0 %808
    %810 = vmax.xlane.f32.xlu0 %v786
    %v811 = vpop.xlane.xlu0 %810
    %812 = vmax.xlane.f32.xlu0 %v787
    %v813 = vpop.xlane.xlu0 %812
    %814 = vmax.xlane.f32.xlu0 %v788
    %v815 = vpop.xlane.xlu0 %814
    %816 = vmax.xlane.f32.xlu0 %v789
    %v817 = vpop.xlane.xlu0 %816
    %818 = vmax.xlane.f32.xlu0 %v790
    %v819 = vpop.xlane.xlu0 %818
    %820 = vmax.xlane.f32.xlu0 %v791
    %v821 = vpop.xlane.xlu0 %820
    %822 = vmax.xlane.f32.xlu0 %v792
    %v823 = vpop.xlane.xlu0 %822
    %824 = vmax.xlane.f32.xlu0 %v793
    %v825 = vpop.xlane.xlu0 %824
    %v826 = vsub.f32 %v778, %v795
    %v827 = vsub.f32 %v779, %v797
    %v828 = vsub.f32 %v780, %v799
    %v829 = vsub.f32 %v781, %v801
    %v830 = vsub.f32 %v782, %v803
    %v831 = vsub.f32 %v783, %v805
    %v832 = vsub.f32 %v784, %v807
    %v833 = vsub.f32 %v785, %v809
    %v834 = vsub.f32 %v786, %v811
    %v835 = vsub.f32 %v787, %v813
    %v836 = vsub.f32 %v788, %v815
    %v837 = vsub.f32 %v789, %v817
    %v838 = vsub.f32 %v790, %v819
    %v839 = vsub.f32 %v791, %v821
    %v840 = vsub.f32 %v792, %v823
    %v841 = vsub.f32 %v793, %v825
    %v842 = vmul.f32 %v826, 1.442695
    %v843 = vpow.pop %v842
    %v844 = vmul.f32 %v827, 1.442695
    %v845 = vpow.pop %v844
    %v846 = vmul.f32 %v828, 1.442695
    %v847 = vpow.pop %v846
    %v848 = vmul.f32 %v829, 1.442695
    %v849 = vpow.pop %v848
    %v850 = vmul.f32 %v830, 1.442695
    %v851 = vpow.pop %v850
    %v852 = vmul.f32 %v831, 1.442695
    %v853 = vpow.pop %v852
    %v854 = vmul.f32 %v832, 1.442695
    %v855 = vpow.pop %v854
    %v856 = vmul.f32 %v833, 1.442695
    %v857 = vpow.pop %v856
    %v858 = vmul.f32 %v834, 1.442695
    %v859 = vpow.pop %v858
    %v860 = vmul.f32 %v835, 1.442695
    %v861 = vpow.pop %v860
    %v862 = vmul.f32 %v836, 1.442695
    %v863 = vpow.pop %v862
    %v864 = vmul.f32 %v837, 1.442695
    %v865 = vpow.pop %v864
    %v866 = vmul.f32 %v838, 1.442695
    %v867 = vpow.pop %v866
    %v868 = vmul.f32 %v839, 1.442695
    %v869 = vpow.pop %v868
    %v870 = vmul.f32 %v840, 1.442695
    %v871 = vpow.pop %v870
    %v872 = vmul.f32 %v841, 1.442695
    %v873 = vpow.pop %v872
    %874 = vmatpush.msra.mxu0 %v756
    %875 = vmatpush.msra.mxu0 %v755
    %876 = vmatpush.msra.mxu0 %v754
    %877 = vmatpush.msra.mxu0 %v753
    %878 = vmatpush.msra.mxu0 %v752
    %879 = vmatpush.msra.mxu0 %v751
    %880 = vmatpush.msra.mxu0 %v750
    %881 = vmatpush.msra.mxu0 %v749
    %882 = vmatpush.msra.mxu0 %v748
    %883 = vmatpush.msra.mxu0 %v747
    %884 = vmatpush.msra.mxu0 %v746
    %885 = vmatpush.msra.mxu0 %v745
    %886 = vmatpush.msra.mxu0 %v744
    %887 = vmatpush.msra.mxu0 %v743
    %888 = vmatpush.msra.mxu0 %v742
    %889 = vmatpush.msra.mxu0 %v741
    %890 = vmatmul.f32.gmra.mxu0 %v843
    %v891 = vpop.f32.mrf.mxu0
    %v892 = vadd.f32 0.0, %v891
    %893 = vmatmul.f32.gmra.mxu0 %v845
    %v894 = vpop.f32.mrf.mxu0
    %v895 = vadd.f32 0.0, %v894
    %896 = vmatmul.f32.gmra.mxu0 %v847
    %v897 = vpop.f32.mrf.mxu0
    %v898 = vadd.f32 0.0, %v897
    %899 = vmatmul.f32.gmra.mxu0 %v849
    %v900 = vpop.f32.mrf.mxu0
    %v901 = vadd.f32 0.0, %v900
    %902 = vmatmul.f32.gmra.mxu0 %v851
    %v903 = vpop.f32.mrf.mxu0
    %v904 = vadd.f32 0.0, %v903
    %905 = vmatmul.f32.gmra.mxu0 %v853
    %v906 = vpop.f32.mrf.mxu0
    %v907 = vadd.f32 0.0, %v906
    %908 = vmatmul.f32.gmra.mxu0 %v855
    %v909 = vpop.f32.mrf.mxu0
    %v910 = vadd.f32 0.0, %v909
    %911 = vmatmul.f32.gmra.mxu0 %v857
    %v912 = vpop.f32.mrf.mxu0
    %v913 = vadd.f32 0.0, %v912
    %914 = vmatmul.f32.gmra.mxu0 %v859
    %v915 = vpop.f32.mrf.mxu0
    %v916 = vadd.f32 0.0, %v915
    %917 = vmatmul.f32.gmra.mxu0 %v861
    %v918 = vpop.f32.mrf.mxu0
    %v919 = vadd.f32 0.0, %v918
    %920 = vmatmul.f32.gmra.mxu0 %v863
    %v921 = vpop.f32.mrf.mxu0
    %v922 = vadd.f32 0.0, %v921
    %923 = vmatmul.f32.gmra.mxu0 %v865
    %v924 = vpop.f32.mrf.mxu0
    %v925 = vadd.f32 0.0, %v924
    %926 = vmatmul.f32.gmra.mxu0 %v867
    %v927 = vpop.f32.mrf.mxu0
    %v928 = vadd.f32 0.0, %v927
    %929 = vmatmul.f32.gmra.mxu0 %v869
    %v930 = vpop.f32.mrf.mxu0
    %v931 = vadd.f32 0.0, %v930
    %932 = vmatmul.f32.gmra.mxu0 %v871
    %v933 = vpop.f32.mrf.mxu0
    %v934 = vadd.f32 0.0, %v933
    %935 = vmatmul.f32.gmra.mxu0 %v873
    %v936 = vpop.f32.mrf.mxu0
    %v937 = vadd.f32 0.0, %v936
    %938 = vdwg.mxu0
    %v940 = vperm.slane %v757, 0
    %v942 = vadd.f32 %v795, %v940
    %v943 = vadd.f32 %v797, %v940
    %v944 = vadd.f32 %v799, %v940
    %v945 = vadd.f32 %v801, %v940
    %v946 = vadd.f32 %v803, %v940
    %v947 = vadd.f32 %v805, %v940
    %v948 = vadd.f32 %v807, %v940
    %v949 = vadd.f32 %v809, %v940
    %v950 = vadd.f32 %v811, %v940
    %v951 = vadd.f32 %v813, %v940
    %v952 = vadd.f32 %v815, %v940
    %v953 = vadd.f32 %v817, %v940
    %v954 = vadd.f32 %v819, %v940
    %v955 = vadd.f32 %v821, %v940
    %v956 = vadd.f32 %v823, %v940
    %v957 = vadd.f32 %v825, %v940
    %v958 = vmax.f32 %v892, 1.1754944e-38
    %v959 = vmax.f32 %v895, 1.1754944e-38
    %v960 = vmax.f32 %v898, 1.1754944e-38
    %v961 = vmax.f32 %v901, 1.1754944e-38
    %v962 = vmax.f32 %v904, 1.1754944e-38
    %v963 = vmax.f32 %v907, 1.1754944e-38
    %v964 = vmax.f32 %v910, 1.1754944e-38
    %v965 = vmax.f32 %v913, 1.1754944e-38
    %v966 = vmax.f32 %v916, 1.1754944e-38
    %v967 = vmax.f32 %v919, 1.1754944e-38
    %v968 = vmax.f32 %v922, 1.1754944e-38
    %v969 = vmax.f32 %v925, 1.1754944e-38
    %v970 = vmax.f32 %v928, 1.1754944e-38
    %v971 = vmax.f32 %v931, 1.1754944e-38
    %v972 = vmax.f32 %v934, 1.1754944e-38
    %v973 = vmax.f32 %v937, 1.1754944e-38
    %v974 = vlog2.pop %v958
    %v975 = vmul.f32 %v974, 0.6931472
    %v976 = vlog2.pop %v959
    %v977 = vmul.f32 %v976, 0.6931472
    %v978 = vlog2.pop %v960
    %v979 = vmul.f32 %v978, 0.6931472
    %v980 = vlog2.pop %v961
    %v981 = vmul.f32 %v980, 0.6931472
    %v982 = vlog2.pop %v962
    %v983 = vmul.f32 %v982, 0.6931472
    %v984 = vlog2.pop %v963
    %v985 = vmul.f32 %v984, 0.6931472
    %v986 = vlog2.pop %v964
    %v987 = vmul.f32 %v986, 0.6931472
    %v988 = vlog2.pop %v965
    %v989 = vmul.f32 %v988, 0.6931472
    %v990 = vlog2.pop %v966
    %v991 = vmul.f32 %v990, 0.6931472
    %v992 = vlog2.pop %v967
    %v993 = vmul.f32 %v992, 0.6931472
    %v994 = vlog2.pop %v968
    %v995 = vmul.f32 %v994, 0.6931472
    %v996 = vlog2.pop %v969
    %v997 = vmul.f32 %v996, 0.6931472
    %v998 = vlog2.pop %v970
    %v999 = vmul.f32 %v998, 0.6931472
    %v1000 = vlog2.pop %v971
    %v1001 = vmul.f32 %v1000, 0.6931472
    %v1002 = vlog2.pop %v972
    %v1003 = vmul.f32 %v1002, 0.6931472
    %v1004 = vlog2.pop %v973
    %v1005 = vmul.f32 %v1004, 0.6931472
    %v1006 = vadd.f32 %v942, %v975
    %v1007 = vadd.f32 %v943, %v977
    %v1008 = vadd.f32 %v944, %v979
    %v1009 = vadd.f32 %v945, %v981
    %v1010 = vadd.f32 %v946, %v983
    %v1011 = vadd.f32 %v947, %v985
    %v1012 = vadd.f32 %v948, %v987
    %v1013 = vadd.f32 %v949, %v989
    %v1014 = vadd.f32 %v950, %v991
    %v1015 = vadd.f32 %v951, %v993
    %v1016 = vadd.f32 %v952, %v995
    %v1017 = vadd.f32 %v953, %v997
    %v1018 = vadd.f32 %v954, %v999
    %v1019 = vadd.f32 %v955, %v1001
    %v1020 = vadd.f32 %v956, %v1003
    %v1021 = vadd.f32 %v957, %v1005
    %s1022 = scalar_lea.vmem [#allocation2], 128
    %v1023 = vld [vmem:[%s1022] sm:$0xff]
    %v1024 = vld [vmem:[%s1022 + $0x8] sm:$0xff]
    %v1025 = vld [vmem:[%s1022 + $0x10] sm:$0xff]
    %v1026 = vld [vmem:[%s1022 + $0x18] sm:$0xff]
    %v1027 = vld [vmem:[%s1022 + $0x20] sm:$0xff]
    %v1028 = vld [vmem:[%s1022 + $0x28] sm:$0xff]
    %v1029 = vld [vmem:[%s1022 + $0x30] sm:$0xff]
    %v1030 = vld [vmem:[%s1022 + $0x38] sm:$0xff]
    %v1031 = vld [vmem:[%s1022 + $0x40] sm:$0xff]
    %v1032 = vld [vmem:[%s1022 + $0x48] sm:$0xff]
    %v1033 = vld [vmem:[%s1022 + $0x50] sm:$0xff]
    %v1034 = vld [vmem:[%s1022 + $0x58] sm:$0xff]
    %v1035 = vld [vmem:[%s1022 + $0x60] sm:$0xff]
    %v1036 = vld [vmem:[%s1022 + $0x68] sm:$0xff]
    %v1037 = vld [vmem:[%s1022 + $0x70] sm:$0xff]
    %v1038 = vld [vmem:[%s1022 + $0x78] sm:$0xff]
    %v1039 = vadd.f32 %v1006, %v1023
    %v1040 = vadd.f32 %v1007, %v1024
    %v1041 = vadd.f32 %v1008, %v1025
    %v1042 = vadd.f32 %v1009, %v1026
    %v1043 = vadd.f32 %v1010, %v1027
    %v1044 = vadd.f32 %v1011, %v1028
    %v1045 = vadd.f32 %v1012, %v1029
    %v1046 = vadd.f32 %v1013, %v1030
    %v1047 = vadd.f32 %v1014, %v1031
    %v1048 = vadd.f32 %v1015, %v1032
    %v1049 = vadd.f32 %v1016, %v1033
    %v1050 = vadd.f32 %v1017, %v1034
    %v1051 = vadd.f32 %v1018, %v1035
    %v1052 = vadd.f32 %v1019, %v1036
    %v1053 = vadd.f32 %v1020, %v1037
    %v1054 = vadd.f32 %v1021, %v1038
    %1055 = vmax.xlane.f32.xlu0 %v1039
    %v1056 = vpop.xlane.xlu0 %1055
    %1057 = vmax.xlane.f32.xlu0 %v1040
    %v1058 = vpop.xlane.xlu0 %1057
    %1059 = vmax.xlane.f32.xlu0 %v1041
    %v1060 = vpop.xlane.xlu0 %1059
    %1061 = vmax.xlane.f32.xlu0 %v1042
    %v1062 = vpop.xlane.xlu0 %1061
    %1063 = vmax.xlane.f32.xlu0 %v1043
    %v1064 = vpop.xlane.xlu0 %1063
    %1065 = vmax.xlane.f32.xlu0 %v1044
    %v1066 = vpop.xlane.xlu0 %1065
    %1067 = vmax.xlane.f32.xlu0 %v1045
    %v1068 = vpop.xlane.xlu0 %1067
    %1069 = vmax.xlane.f32.xlu0 %v1046
    %v1070 = vpop.xlane.xlu0 %1069
    %1071 = vmax.xlane.f32.xlu0 %v1047
    %v1072 = vpop.xlane.xlu0 %1071
    %1073 = vmax.xlane.f32.xlu0 %v1048
    %v1074 = vpop.xlane.xlu0 %1073
    %1075 = vmax.xlane.f32.xlu0 %v1049
    %v1076 = vpop.xlane.xlu0 %1075
    %1077 = vmax.xlane.f32.xlu0 %v1050
    %v1078 = vpop.xlane.xlu0 %1077
    %1079 = vmax.xlane.f32.xlu0 %v1051
    %v1080 = vpop.xlane.xlu0 %1079
    %1081 = vmax.xlane.f32.xlu0 %v1052
    %v1082 = vpop.xlane.xlu0 %1081
    %1083 = vmax.xlane.f32.xlu0 %v1053
    %v1084 = vpop.xlane.xlu0 %1083
    %1085 = vmax.xlane.f32.xlu0 %v1054
    %v1086 = vpop.xlane.xlu0 %1085
    %v1087 = vsub.f32 %v1039, %v1056
    %v1088 = vsub.f32 %v1040, %v1058
    %v1089 = vsub.f32 %v1041, %v1060
    %v1090 = vsub.f32 %v1042, %v1062
    %v1091 = vsub.f32 %v1043, %v1064
    %v1092 = vsub.f32 %v1044, %v1066
    %v1093 = vsub.f32 %v1045, %v1068
    %v1094 = vsub.f32 %v1046, %v1070
    %v1095 = vsub.f32 %v1047, %v1072
    %v1096 = vsub.f32 %v1048, %v1074
    %v1097 = vsub.f32 %v1049, %v1076
    %v1098 = vsub.f32 %v1050, %v1078
    %v1099 = vsub.f32 %v1051, %v1080
    %v1100 = vsub.f32 %v1052, %v1082
    %v1101 = vsub.f32 %v1053, %v1084
    %v1102 = vsub.f32 %v1054, %v1086
    %v1103 = vmul.f32 %v1087, 1.442695
    %v1104 = vpow.pop %v1103
    %v1105 = vmul.f32 %v1088, 1.442695
    %v1106 = vpow.pop %v1105
    %v1107 = vmul.f32 %v1089, 1.442695
    %v1108 = vpow.pop %v1107
    %v1109 = vmul.f32 %v1090, 1.442695
    %v1110 = vpow.pop %v1109
    %v1111 = vmul.f32 %v1091, 1.442695
    %v1112 = vpow.pop %v1111
    %v1113 = vmul.f32 %v1092, 1.442695
    %v1114 = vpow.pop %v1113
    %v1115 = vmul.f32 %v1093, 1.442695
    %v1116 = vpow.pop %v1115
    %v1117 = vmul.f32 %v1094, 1.442695
    %v1118 = vpow.pop %v1117
    %v1119 = vmul.f32 %v1095, 1.442695
    %v1120 = vpow.pop %v1119
    %v1121 = vmul.f32 %v1096, 1.442695
    %v1122 = vpow.pop %v1121
    %v1123 = vmul.f32 %v1097, 1.442695
    %v1124 = vpow.pop %v1123
    %v1125 = vmul.f32 %v1098, 1.442695
    %v1126 = vpow.pop %v1125
    %v1127 = vmul.f32 %v1099, 1.442695
    %v1128 = vpow.pop %v1127
    %v1129 = vmul.f32 %v1100, 1.442695
    %v1130 = vpow.pop %v1129
    %v1131 = vmul.f32 %v1101, 1.442695
    %v1132 = vpow.pop %v1131
    %v1133 = vmul.f32 %v1102, 1.442695
    %v1134 = vpow.pop %v1133
    %1135 = vmatpush.msra.mxu0 %v756
    %1136 = vmatpush.msra.mxu0 %v755
    %1137 = vmatpush.msra.mxu0 %v754
    %1138 = vmatpush.msra.mxu0 %v753
    %1139 = vmatpush.msra.mxu0 %v752
    %1140 = vmatpush.msra.mxu0 %v751
    %1141 = vmatpush.msra.mxu0 %v750
    %1142 = vmatpush.msra.mxu0 %v749
    %1143 = vmatpush.msra.mxu0 %v748
    %1144 = vmatpush.msra.mxu0 %v747
    %1145 = vmatpush.msra.mxu0 %v746
    %1146 = vmatpush.msra.mxu0 %v745
    %1147 = vmatpush.msra.mxu0 %v744
    %1148 = vmatpush.msra.mxu0 %v743
    %1149 = vmatpush.msra.mxu0 %v742
    %1150 = vmatpush.msra.mxu0 %v741
    %1151 = vmatmul.f32.gmra.mxu0 %v1104
    %v1152 = vpop.f32.mrf.mxu0
    %v1153 = vadd.f32 0.0, %v1152
    %1154 = vmatmul.f32.gmra.mxu0 %v1106
    %v1155 = vpop.f32.mrf.mxu0
    %v1156 = vadd.f32 0.0, %v1155
    %1157 = vmatmul.f32.gmra.mxu0 %v1108
    %v1158 = vpop.f32.mrf.mxu0
    %v1159 = vadd.f32 0.0, %v1158
    %1160 = vmatmul.f32.gmra.mxu0 %v1110
    %v1161 = vpop.f32.mrf.mxu0
    %v1162 = vadd.f32 0.0, %v1161
    %1163 = vmatmul.f32.gmra.mxu0 %v1112
    %v1164 = vpop.f32.mrf.mxu0
    %v1165 = vadd.f32 0.0, %v1164
    %1166 = vmatmul.f32.gmra.mxu0 %v1114
    %v1167 = vpop.f32.mrf.mxu0
    %v1168 = vadd.f32 0.0, %v1167
    %1169 = vmatmul.f32.gmra.mxu0 %v1116
    %v1170 = vpop.f32.mrf.mxu0
    %v1171 = vadd.f32 0.0, %v1170
    %1172 = vmatmul.f32.gmra.mxu0 %v1118
    %v1173 = vpop.f32.mrf.mxu0
    %v1174 = vadd.f32 0.0, %v1173
    %1175 = vmatmul.f32.gmra.mxu0 %v1120
    %v1176 = vpop.f32.mrf.mxu0
    %v1177 = vadd.f32 0.0, %v1176
    %1178 = vmatmul.f32.gmra.mxu0 %v1122
    %v1179 = vpop.f32.mrf.mxu0
    %v1180 = vadd.f32 0.0, %v1179
    %1181 = vmatmul.f32.gmra.mxu0 %v1124
    %v1182 = vpop.f32.mrf.mxu0
    %v1183 = vadd.f32 0.0, %v1182
    %1184 = vmatmul.f32.gmra.mxu0 %v1126
    %v1185 = vpop.f32.mrf.mxu0
    %v1186 = vadd.f32 0.0, %v1185
    %1187 = vmatmul.f32.gmra.mxu0 %v1128
    %v1188 = vpop.f32.mrf.mxu0
    %v1189 = vadd.f32 0.0, %v1188
    %1190 = vmatmul.f32.gmra.mxu0 %v1130
    %v1191 = vpop.f32.mrf.mxu0
    %v1192 = vadd.f32 0.0, %v1191
    %1193 = vmatmul.f32.gmra.mxu0 %v1132
    %v1194 = vpop.f32.mrf.mxu0
    %v1195 = vadd.f32 0.0, %v1194
    %1196 = vmatmul.f32.gmra.mxu0 %v1134
    %v1197 = vpop.f32.mrf.mxu0
    %v1198 = vadd.f32 0.0, %v1197
    %1199 = vdwg.mxu0
    %v1200 = vadd.f32 %v1056, %v940
    %v1201 = vadd.f32 %v1058, %v940
    %v1202 = vadd.f32 %v1060, %v940
    %v1203 = vadd.f32 %v1062, %v940
    %v1204 = vadd.f32 %v1064, %v940
    %v1205 = vadd.f32 %v1066, %v940
    %v1206 = vadd.f32 %v1068, %v940
    %v1207 = vadd.f32 %v1070, %v940
    %v1208 = vadd.f32 %v1072, %v940
    %v1209 = vadd.f32 %v1074, %v940
    %v1210 = vadd.f32 %v1076, %v940
    %v1211 = vadd.f32 %v1078, %v940
    %v1212 = vadd.f32 %v1080, %v940
    %v1213 = vadd.f32 %v1082, %v940
    %v1214 = vadd.f32 %v1084, %v940
    %v1215 = vadd.f32 %v1086, %v940
    %v1216 = vmax.f32 %v1153, 1.1754944e-38
    %v1217 = vmax.f32 %v1156, 1.1754944e-38
    %v1218 = vmax.f32 %v1159, 1.1754944e-38
    %v1219 = vmax.f32 %v1162, 1.1754944e-38
    %v1220 = vmax.f32 %v1165, 1.1754944e-38
    %v1221 = vmax.f32 %v1168, 1.1754944e-38
    %v1222 = vmax.f32 %v1171, 1.1754944e-38
    %v1223 = vmax.f32 %v1174, 1.1754944e-38
    %v1224 = vmax.f32 %v1177, 1.1754944e-38
    %v1225 = vmax.f32 %v1180, 1.1754944e-38
    %v1226 = vmax.f32 %v1183, 1.1754944e-38
    %v1227 = vmax.f32 %v1186, 1.1754944e-38
    %v1228 = vmax.f32 %v1189, 1.1754944e-38
    %v1229 = vmax.f32 %v1192, 1.1754944e-38
    %v1230 = vmax.f32 %v1195, 1.1754944e-38
    %v1231 = vmax.f32 %v1198, 1.1754944e-38
    %v1232 = vlog2.pop %v1216
    %v1233 = vmul.f32 %v1232, 0.6931472
    %v1234 = vlog2.pop %v1217
    %v1235 = vmul.f32 %v1234, 0.6931472
    %v1236 = vlog2.pop %v1218
    %v1237 = vmul.f32 %v1236, 0.6931472
    %v1238 = vlog2.pop %v1219
    %v1239 = vmul.f32 %v1238, 0.6931472
    %v1240 = vlog2.pop %v1220
    %v1241 = vmul.f32 %v1240, 0.6931472
    %v1242 = vlog2.pop %v1221
    %v1243 = vmul.f32 %v1242, 0.6931472
    %v1244 = vlog2.pop %v1222
    %v1245 = vmul.f32 %v1244, 0.6931472
    %v1246 = vlog2.pop %v1223
    %v1247 = vmul.f32 %v1246, 0.6931472
    %v1248 = vlog2.pop %v1224
    %v1249 = vmul.f32 %v1248, 0.6931472
    %v1250 = vlog2.pop %v1225
    %v1251 = vmul.f32 %v1250, 0.6931472
    %v1252 = vlog2.pop %v1226
    %v1253 = vmul.f32 %v1252, 0.6931472
    %v1254 = vlog2.pop %v1227
    %v1255 = vmul.f32 %v1254, 0.6931472
    %v1256 = vlog2.pop %v1228
    %v1257 = vmul.f32 %v1256, 0.6931472
    %v1258 = vlog2.pop %v1229
    %v1259 = vmul.f32 %v1258, 0.6931472
    %v1260 = vlog2.pop %v1230
    %v1261 = vmul.f32 %v1260, 0.6931472
    %v1262 = vlog2.pop %v1231
    %v1263 = vmul.f32 %v1262, 0.6931472
    %v1264 = vadd.f32 %v1200, %v1233
    %v1265 = vadd.f32 %v1201, %v1235
    %v1266 = vadd.f32 %v1202, %v1237
    %v1267 = vadd.f32 %v1203, %v1239
    %v1268 = vadd.f32 %v1204, %v1241
    %v1269 = vadd.f32 %v1205, %v1243
    %v1270 = vadd.f32 %v1206, %v1245
    %v1271 = vadd.f32 %v1207, %v1247
    %v1272 = vadd.f32 %v1208, %v1249
    %v1273 = vadd.f32 %v1209, %v1251
    %v1274 = vadd.f32 %v1210, %v1253
    %v1275 = vadd.f32 %v1211, %v1255
    %v1276 = vadd.f32 %v1212, %v1257
    %v1277 = vadd.f32 %v1213, %v1259
    %v1278 = vadd.f32 %v1214, %v1261
    %v1279 = vadd.f32 %v1215, %v1263
    %s1280 = scalar_lea.vmem [#allocation2], 256
    %v1281 = vld [vmem:[%s1280] sm:$0xff]
    %v1282 = vld [vmem:[%s1280 + $0x8] sm:$0xff]
    %v1283 = vld [vmem:[%s1280 + $0x10] sm:$0xff]
    %v1284 = vld [vmem:[%s1280 + $0x18] sm:$0xff]
    %v1285 = vld [vmem:[%s1280 + $0x20] sm:$0xff]
    %v1286 = vld [vmem:[%s1280 + $0x28] sm:$0xff]
    %v1287 = vld [vmem:[%s1280 + $0x30] sm:$0xff]
    %v1288 = vld [vmem:[%s1280 + $0x38] sm:$0xff]
    %v1289 = vld [vmem:[%s1280 + $0x40] sm:$0xff]
    %v1290 = vld [vmem:[%s1280 + $0x48] sm:$0xff]
    %v1291 = vld [vmem:[%s1280 + $0x50] sm:$0xff]
    %v1292 = vld [vmem:[%s1280 + $0x58] sm:$0xff]
    %v1293 = vld [vmem:[%s1280 + $0x60] sm:$0xff]
    %v1294 = vld [vmem:[%s1280 + $0x68] sm:$0xff]
    %v1295 = vld [vmem:[%s1280 + $0x70] sm:$0xff]
    %v1296 = vld [vmem:[%s1280 + $0x78] sm:$0xff]
    %v1297 = vadd.f32 %v1264, %v1281
    %v1298 = vadd.f32 %v1265, %v1282
    %v1299 = vadd.f32 %v1266, %v1283
    %v1300 = vadd.f32 %v1267, %v1284
    %v1301 = vadd.f32 %v1268, %v1285
    %v1302 = vadd.f32 %v1269, %v1286
    %v1303 = vadd.f32 %v1270, %v1287
    %v1304 = vadd.f32 %v1271, %v1288
    %v1305 = vadd.f32 %v1272, %v1289
    %v1306 = vadd.f32 %v1273, %v1290
    %v1307 = vadd.f32 %v1274, %v1291
    %v1308 = vadd.f32 %v1275, %v1292
    %v1309 = vadd.f32 %v1276, %v1293
    %v1310 = vadd.f32 %v1277, %v1294
    %v1311 = vadd.f32 %v1278, %v1295
    %v1312 = vadd.f32 %v1279, %v1296
    %1313 = vmax.xlane.f32.xlu0 %v1297
    %v1314 = vpop.xlane.xlu0 %1313
    %1315 = vmax.xlane.f32.xlu0 %v1298
    %v1316 = vpop.xlane.xlu0 %1315
    %1317 = vmax.xlane.f32.xlu0 %v1299
    %v1318 = vpop.xlane.xlu0 %1317
    %1319 = vmax.xlane.f32.xlu0 %v1300
    %v1320 = vpop.xlane.xlu0 %1319
    %1321 = vmax.xlane.f32.xlu0 %v1301
    %v1322 = vpop.xlane.xlu0 %1321
    %1323 = vmax.xlane.f32.xlu0 %v1302
    %v1324 = vpop.xlane.xlu0 %1323
    %1325 = vmax.xlane.f32.xlu0 %v1303
    %v1326 = vpop.xlane.xlu0 %1325
    %1327 = vmax.xlane.f32.xlu0 %v1304
    %v1328 = vpop.xlane.xlu0 %1327
    %1329 = vmax.xlane.f32.xlu0 %v1305
    %v1330 = vpop.xlane.xlu0 %1329
    %1331 = vmax.xlane.f32.xlu0 %v1306
    %v1332 = vpop.xlane.xlu0 %1331
    %1333 = vmax.xlane.f32.xlu0 %v1307
    %v1334 = vpop.xlane.xlu0 %1333
    %1335 = vmax.xlane.f32.xlu0 %v1308
    %v1336 = vpop.xlane.xlu0 %1335
    %1337 = vmax.xlane.f32.xlu0 %v1309
    %v1338 = vpop.xlane.xlu0 %1337
    %1339 = vmax.xlane.f32.xlu0 %v1310
    %v1340 = vpop.xlane.xlu0 %1339
    %1341 = vmax.xlane.f32.xlu0 %v1311
    %v1342 = vpop.xlane.xlu0 %1341
    %1343 = vmax.xlane.f32.xlu0 %v1312
    %v1344 = vpop.xlane.xlu0 %1343
    %v1345 = vsub.f32 %v1297, %v1314
    %v1346 = vsub.f32 %v1298, %v1316
    %v1347 = vsub.f32 %v1299, %v1318
    %v1348 = vsub.f32 %v1300, %v1320
    %v1349 = vsub.f32 %v1301, %v1322
    %v1350 = vsub.f32 %v1302, %v1324
    %v1351 = vsub.f32 %v1303, %v1326
    %v1352 = vsub.f32 %v1304, %v1328
    %v1353 = vsub.f32 %v1305, %v1330
    %v1354 = vsub.f32 %v1306, %v1332
    %v1355 = vsub.f32 %v1307, %v1334
    %v1356 = vsub.f32 %v1308, %v1336
    %v1357 = vsub.f32 %v1309, %v1338
    %v1358 = vsub.f32 %v1310, %v1340
    %v1359 = vsub.f32 %v1311, %v1342
    %v1360 = vsub.f32 %v1312, %v1344
    %v1361 = vmul.f32 %v1345, 1.442695
    %v1362 = vpow.pop %v1361
    %v1363 = vmul.f32 %v1346, 1.442695
    %v1364 = vpow.pop %v1363
    %v1365 = vmul.f32 %v1347, 1.442695
    %v1366 = vpow.pop %v1365
    %v1367 = vmul.f32 %v1348, 1.442695
    %v1368 = vpow.pop %v1367
    %v1369 = vmul.f32 %v1349, 1.442695
    %v1370 = vpow.pop %v1369
    %v1371 = vmul.f32 %v1350, 1.442695
    %v1372 = vpow.pop %v1371
    %v1373 = vmul.f32 %v1351, 1.442695
    %v1374 = vpow.pop %v1373
    %v1375 = vmul.f32 %v1352, 1.442695
    %v1376 = vpow.pop %v1375
    %v1377 = vmul.f32 %v1353, 1.442695
    %v1378 = vpow.pop %v1377
    %v1379 = vmul.f32 %v1354, 1.442695
    %v1380 = vpow.pop %v1379
    %v1381 = vmul.f32 %v1355, 1.442695
    %v1382 = vpow.pop %v1381
    %v1383 = vmul.f32 %v1356, 1.442695
    %v1384 = vpow.pop %v1383
    %v1385 = vmul.f32 %v1357, 1.442695
    %v1386 = vpow.pop %v1385
    %v1387 = vmul.f32 %v1358, 1.442695
    %v1388 = vpow.pop %v1387
    %v1389 = vmul.f32 %v1359, 1.442695
    %v1390 = vpow.pop %v1389
    %v1391 = vmul.f32 %v1360, 1.442695
    %v1392 = vpow.pop %v1391
    %1393 = vmatpush.msra.mxu0 %v756
    %1394 = vmatpush.msra.mxu0 %v755
    %1395 = vmatpush.msra.mxu0 %v754
    %1396 = vmatpush.msra.mxu0 %v753
    %1397 = vmatpush.msra.mxu0 %v752
    %1398 = vmatpush.msra.mxu0 %v751
    %1399 = vmatpush.msra.mxu0 %v750
    %1400 = vmatpush.msra.mxu0 %v749
    %1401 = vmatpush.msra.mxu0 %v748
    %1402 = vmatpush.msra.mxu0 %v747
    %1403 = vmatpush.msra.mxu0 %v746
    %1404 = vmatpush.msra.mxu0 %v745
    %1405 = vmatpush.msra.mxu0 %v744
    %1406 = vmatpush.msra.mxu0 %v743
    %1407 = vmatpush.msra.mxu0 %v742
    %1408 = vmatpush.msra.mxu0 %v741
    %1409 = vmatmul.f32.gmra.mxu0 %v1362
    %v1410 = vpop.f32.mrf.mxu0
    %v1411 = vadd.f32 0.0, %v1410
    %1412 = vmatmul.f32.gmra.mxu0 %v1364
    %v1413 = vpop.f32.mrf.mxu0
    %v1414 = vadd.f32 0.0, %v1413
    %1415 = vmatmul.f32.gmra.mxu0 %v1366
    %v1416 = vpop.f32.mrf.mxu0
    %v1417 = vadd.f32 0.0, %v1416
    %1418 = vmatmul.f32.gmra.mxu0 %v1368
    %v1419 = vpop.f32.mrf.mxu0
    %v1420 = vadd.f32 0.0, %v1419
    %1421 = vmatmul.f32.gmra.mxu0 %v1370
    %v1422 = vpop.f32.mrf.mxu0
    %v1423 = vadd.f32 0.0, %v1422
    %1424 = vmatmul.f32.gmra.mxu0 %v1372
    %v1425 = vpop.f32.mrf.mxu0
    %v1426 = vadd.f32 0.0, %v1425
    %1427 = vmatmul.f32.gmra.mxu0 %v1374
    %v1428 = vpop.f32.mrf.mxu0
    %v1429 = vadd.f32 0.0, %v1428
    %1430 = vmatmul.f32.gmra.mxu0 %v1376
    %v1431 = vpop.f32.mrf.mxu0
    %v1432 = vadd.f32 0.0, %v1431
    %1433 = vmatmul.f32.gmra.mxu0 %v1378
    %v1434 = vpop.f32.mrf.mxu0
    %v1435 = vadd.f32 0.0, %v1434
    %1436 = vmatmul.f32.gmra.mxu0 %v1380
    %v1437 = vpop.f32.mrf.mxu0
    %v1438 = vadd.f32 0.0, %v1437
    %1439 = vmatmul.f32.gmra.mxu0 %v1382
    %v1440 = vpop.f32.mrf.mxu0
    %v1441 = vadd.f32 0.0, %v1440
    %1442 = vmatmul.f32.gmra.mxu0 %v1384
    %v1443 = vpop.f32.mrf.mxu0
    %v1444 = vadd.f32 0.0, %v1443
    %1445 = vmatmul.f32.gmra.mxu0 %v1386
    %v1446 = vpop.f32.mrf.mxu0
    %v1447 = vadd.f32 0.0, %v1446
    %1448 = vmatmul.f32.gmra.mxu0 %v1388
    %v1449 = vpop.f32.mrf.mxu0
    %v1450 = vadd.f32 0.0, %v1449
    %1451 = vmatmul.f32.gmra.mxu0 %v1390
    %v1452 = vpop.f32.mrf.mxu0
    %v1453 = vadd.f32 0.0, %v1452
    %1454 = vmatmul.f32.gmra.mxu0 %v1392
    %v1455 = vpop.f32.mrf.mxu0
    %v1456 = vadd.f32 0.0, %v1455
    %1457 = vdwg.mxu0
    %v1458 = vadd.f32 %v1314, %v940
    %v1459 = vadd.f32 %v1316, %v940
    %v1460 = vadd.f32 %v1318, %v940
    %v1461 = vadd.f32 %v1320, %v940
    %v1462 = vadd.f32 %v1322, %v940
    %v1463 = vadd.f32 %v1324, %v940
    %v1464 = vadd.f32 %v1326, %v940
    %v1465 = vadd.f32 %v1328, %v940
    %v1466 = vadd.f32 %v1330, %v940
    %v1467 = vadd.f32 %v1332, %v940
    %v1468 = vadd.f32 %v1334, %v940
    %v1469 = vadd.f32 %v1336, %v940
    %v1470 = vadd.f32 %v1338, %v940
    %v1471 = vadd.f32 %v1340, %v940
    %v1472 = vadd.f32 %v1342, %v940
    %v1473 = vadd.f32 %v1344, %v940
    %v1474 = vmax.f32 %v1411, 1.1754944e-38
    %v1475 = vmax.f32 %v1414, 1.1754944e-38
    %v1476 = vmax.f32 %v1417, 1.1754944e-38
    %v1477 = vmax.f32 %v1420, 1.1754944e-38
    %v1478 = vmax.f32 %v1423, 1.1754944e-38
    %v1479 = vmax.f32 %v1426, 1.1754944e-38
    %v1480 = vmax.f32 %v1429, 1.1754944e-38
    %v1481 = vmax.f32 %v1432, 1.1754944e-38
    %v1482 = vmax.f32 %v1435, 1.1754944e-38
    %v1483 = vmax.f32 %v1438, 1.1754944e-38
    %v1484 = vmax.f32 %v1441, 1.1754944e-38
    %v1485 = vmax.f32 %v1444, 1.1754944e-38
    %v1486 = vmax.f32 %v1447, 1.1754944e-38
    %v1487 = vmax.f32 %v1450, 1.1754944e-38
    %v1488 = vmax.f32 %v1453, 1.1754944e-38
    %v1489 = vmax.f32 %v1456, 1.1754944e-38
    %v1490 = vlog2.pop %v1474
    %v1491 = vmul.f32 %v1490, 0.6931472
    %v1492 = vlog2.pop %v1475
    %v1493 = vmul.f32 %v1492, 0.6931472
    %v1494 = vlog2.pop %v1476
    %v1495 = vmul.f32 %v1494, 0.6931472
    %v1496 = vlog2.pop %v1477
    %v1497 = vmul.f32 %v1496, 0.6931472
    %v1498 = vlog2.pop %v1478
    %v1499 = vmul.f32 %v1498, 0.6931472
    %v1500 = vlog2.pop %v1479
    %v1501 = vmul.f32 %v1500, 0.6931472
    %v1502 = vlog2.pop %v1480
    %v1503 = vmul.f32 %v1502, 0.6931472
    %v1504 = vlog2.pop %v1481
    %v1505 = vmul.f32 %v1504, 0.6931472
    %v1506 = vlog2.pop %v1482
    %v1507 = vmul.f32 %v1506, 0.6931472
    %v1508 = vlog2.pop %v1483
    %v1509 = vmul.f32 %v1508, 0.6931472
    %v1510 = vlog2.pop %v1484
    %v1511 = vmul.f32 %v1510, 0.6931472
    %v1512 = vlog2.pop %v1485
    %v1513 = vmul.f32 %v1512, 0.6931472
    %v1514 = vlog2.pop %v1486
    %v1515 = vmul.f32 %v1514, 0.6931472
    %v1516 = vlog2.pop %v1487
    %v1517 = vmul.f32 %v1516, 0.6931472
    %v1518 = vlog2.pop %v1488
    %v1519 = vmul.f32 %v1518, 0.6931472
    %v1520 = vlog2.pop %v1489
    %v1521 = vmul.f32 %v1520, 0.6931472
    %v1522 = vadd.f32 %v1458, %v1491
    %v1523 = vadd.f32 %v1459, %v1493
    %v1524 = vadd.f32 %v1460, %v1495
    %v1525 = vadd.f32 %v1461, %v1497
    %v1526 = vadd.f32 %v1462, %v1499
    %v1527 = vadd.f32 %v1463, %v1501
    %v1528 = vadd.f32 %v1464, %v1503
    %v1529 = vadd.f32 %v1465, %v1505
    %v1530 = vadd.f32 %v1466, %v1507
    %v1531 = vadd.f32 %v1467, %v1509
    %v1532 = vadd.f32 %v1468, %v1511
    %v1533 = vadd.f32 %v1469, %v1513
    %v1534 = vadd.f32 %v1470, %v1515
    %v1535 = vadd.f32 %v1471, %v1517
    %v1536 = vadd.f32 %v1472, %v1519
    %v1537 = vadd.f32 %v1473, %v1521
    %s1538 = scalar_lea.vmem [#allocation2], 384
    %v1539 = vld [vmem:[%s1538] sm:$0xff]
    %v1540 = vld [vmem:[%s1538 + $0x8] sm:$0xff]
    %v1541 = vld [vmem:[%s1538 + $0x10] sm:$0xff]
    %v1542 = vld [vmem:[%s1538 + $0x18] sm:$0xff]
    %v1543 = vld [vmem:[%s1538 + $0x20] sm:$0xff]
    %v1544 = vld [vmem:[%s1538 + $0x28] sm:$0xff]
    %v1545 = vld [vmem:[%s1538 + $0x30] sm:$0xff]
    %v1546 = vld [vmem:[%s1538 + $0x38] sm:$0xff]
    %v1547 = vld [vmem:[%s1538 + $0x40] sm:$0xff]
    %v1548 = vld [vmem:[%s1538 + $0x48] sm:$0xff]
    %v1549 = vld [vmem:[%s1538 + $0x50] sm:$0xff]
    %v1550 = vld [vmem:[%s1538 + $0x58] sm:$0xff]
    %v1551 = vld [vmem:[%s1538 + $0x60] sm:$0xff]
    %v1552 = vld [vmem:[%s1538 + $0x68] sm:$0xff]
    %v1553 = vld [vmem:[%s1538 + $0x70] sm:$0xff]
    %v1554 = vld [vmem:[%s1538 + $0x78] sm:$0xff]
    %v1555 = vadd.f32 %v1522, %v1539
    %v1556 = vadd.f32 %v1523, %v1540
    %v1557 = vadd.f32 %v1524, %v1541
    %v1558 = vadd.f32 %v1525, %v1542
    %v1559 = vadd.f32 %v1526, %v1543
    %v1560 = vadd.f32 %v1527, %v1544
    %v1561 = vadd.f32 %v1528, %v1545
    %v1562 = vadd.f32 %v1529, %v1546
    %v1563 = vadd.f32 %v1530, %v1547
    %v1564 = vadd.f32 %v1531, %v1548
    %v1565 = vadd.f32 %v1532, %v1549
    %v1566 = vadd.f32 %v1533, %v1550
    %v1567 = vadd.f32 %v1534, %v1551
    %v1568 = vadd.f32 %v1535, %v1552
    %v1569 = vadd.f32 %v1536, %v1553
    %v1570 = vadd.f32 %v1537, %v1554
    %1571 = vmax.xlane.f32.xlu0 %v1555
    %v1572 = vpop.xlane.xlu0 %1571
    %1573 = vmax.xlane.f32.xlu0 %v1556
    %v1574 = vpop.xlane.xlu0 %1573
    %1575 = vmax.xlane.f32.xlu0 %v1557
    %v1576 = vpop.xlane.xlu0 %1575
    %1577 = vmax.xlane.f32.xlu0 %v1558
    %v1578 = vpop.xlane.xlu0 %1577
    %1579 = vmax.xlane.f32.xlu0 %v1559
    %v1580 = vpop.xlane.xlu0 %1579
    %1581 = vmax.xlane.f32.xlu0 %v1560
    %v1582 = vpop.xlane.xlu0 %1581
    %1583 = vmax.xlane.f32.xlu0 %v1561
    %v1584 = vpop.xlane.xlu0 %1583
    %1585 = vmax.xlane.f32.xlu0 %v1562
    %v1586 = vpop.xlane.xlu0 %1585
    %1587 = vmax.xlane.f32.xlu0 %v1563
    %v1588 = vpop.xlane.xlu0 %1587
    %1589 = vmax.xlane.f32.xlu0 %v1564
    %v1590 = vpop.xlane.xlu0 %1589
    %1591 = vmax.xlane.f32.xlu0 %v1565
    %v1592 = vpop.xlane.xlu0 %1591
    %1593 = vmax.xlane.f32.xlu0 %v1566
    %v1594 = vpop.xlane.xlu0 %1593
    %1595 = vmax.xlane.f32.xlu0 %v1567
    %v1596 = vpop.xlane.xlu0 %1595
    %1597 = vmax.xlane.f32.xlu0 %v1568
    %v1598 = vpop.xlane.xlu0 %1597
    %1599 = vmax.xlane.f32.xlu0 %v1569
    %v1600 = vpop.xlane.xlu0 %1599
    %1601 = vmax.xlane.f32.xlu0 %v1570
    %v1602 = vpop.xlane.xlu0 %1601
    %v1603 = vsub.f32 %v1555, %v1572
    %v1604 = vsub.f32 %v1556, %v1574
    %v1605 = vsub.f32 %v1557, %v1576
    %v1606 = vsub.f32 %v1558, %v1578
    %v1607 = vsub.f32 %v1559, %v1580
    %v1608 = vsub.f32 %v1560, %v1582
    %v1609 = vsub.f32 %v1561, %v1584
    %v1610 = vsub.f32 %v1562, %v1586
    %v1611 = vsub.f32 %v1563, %v1588
    %v1612 = vsub.f32 %v1564, %v1590
    %v1613 = vsub.f32 %v1565, %v1592
    %v1614 = vsub.f32 %v1566, %v1594
    %v1615 = vsub.f32 %v1567, %v1596
    %v1616 = vsub.f32 %v1568, %v1598
    %v1617 = vsub.f32 %v1569, %v1600
    %v1618 = vsub.f32 %v1570, %v1602
    %v1619 = vmul.f32 %v1603, 1.442695
    %v1620 = vpow.pop %v1619
    %v1621 = vmul.f32 %v1604, 1.442695
    %v1622 = vpow.pop %v1621
    %v1623 = vmul.f32 %v1605, 1.442695
    %v1624 = vpow.pop %v1623
    %v1625 = vmul.f32 %v1606, 1.442695
    %v1626 = vpow.pop %v1625
    %v1627 = vmul.f32 %v1607, 1.442695
    %v1628 = vpow.pop %v1627
    %v1629 = vmul.f32 %v1608, 1.442695
    %v1630 = vpow.pop %v1629
    %v1631 = vmul.f32 %v1609, 1.442695
    %v1632 = vpow.pop %v1631
    %v1633 = vmul.f32 %v1610, 1.442695
    %v1634 = vpow.pop %v1633
    %v1635 = vmul.f32 %v1611, 1.442695
    %v1636 = vpow.pop %v1635
    %v1637 = vmul.f32 %v1612, 1.442695
    %v1638 = vpow.pop %v1637
    %v1639 = vmul.f32 %v1613, 1.442695
    %v1640 = vpow.pop %v1639
    %v1641 = vmul.f32 %v1614, 1.442695
    %v1642 = vpow.pop %v1641
    %v1643 = vmul.f32 %v1615, 1.442695
    %v1644 = vpow.pop %v1643
    %v1645 = vmul.f32 %v1616, 1.442695
    %v1646 = vpow.pop %v1645
    %v1647 = vmul.f32 %v1617, 1.442695
    %v1648 = vpow.pop %v1647
    %v1649 = vmul.f32 %v1618, 1.442695
    %v1650 = vpow.pop %v1649
    %1651 = vmatpush.msra.mxu0 %v756
    %1652 = vmatpush.msra.mxu0 %v755
    %1653 = vmatpush.msra.mxu0 %v754
    %1654 = vmatpush.msra.mxu0 %v753
    %1655 = vmatpush.msra.mxu0 %v752
    %1656 = vmatpush.msra.mxu0 %v751
    %1657 = vmatpush.msra.mxu0 %v750
    %1658 = vmatpush.msra.mxu0 %v749
    %1659 = vmatpush.msra.mxu0 %v748
    %1660 = vmatpush.msra.mxu0 %v747
    %1661 = vmatpush.msra.mxu0 %v746
    %1662 = vmatpush.msra.mxu0 %v745
    %1663 = vmatpush.msra.mxu0 %v744
    %1664 = vmatpush.msra.mxu0 %v743
    %1665 = vmatpush.msra.mxu0 %v742
    %1666 = vmatpush.msra.mxu0 %v741
    %1667 = vmatmul.f32.gmra.mxu0 %v1620
    %v1668 = vpop.f32.mrf.mxu0
    %v1669 = vadd.f32 0.0, %v1668
    %1670 = vmatmul.f32.gmra.mxu0 %v1622
    %v1671 = vpop.f32.mrf.mxu0
    %v1672 = vadd.f32 0.0, %v1671
    %1673 = vmatmul.f32.gmra.mxu0 %v1624
    %v1674 = vpop.f32.mrf.mxu0
    %v1675 = vadd.f32 0.0, %v1674
    %1676 = vmatmul.f32.gmra.mxu0 %v1626
    %v1677 = vpop.f32.mrf.mxu0
    %v1678 = vadd.f32 0.0, %v1677
    %1679 = vmatmul.f32.gmra.mxu0 %v1628
    %v1680 = vpop.f32.mrf.mxu0
    %v1681 = vadd.f32 0.0, %v1680
    %1682 = vmatmul.f32.gmra.mxu0 %v1630
    %v1683 = vpop.f32.mrf.mxu0
    %v1684 = vadd.f32 0.0, %v1683
    %1685 = vmatmul.f32.gmra.mxu0 %v1632
    %v1686 = vpop.f32.mrf.mxu0
    %v1687 = vadd.f32 0.0, %v1686
    %1688 = vmatmul.f32.gmra.mxu0 %v1634
    %v1689 = vpop.f32.mrf.mxu0
    %v1690 = vadd.f32 0.0, %v1689
    %1691 = vmatmul.f32.gmra.mxu0 %v1636
    %v1692 = vpop.f32.mrf.mxu0
    %v1693 = vadd.f32 0.0, %v1692
    %1694 = vmatmul.f32.gmra.mxu0 %v1638
    %v1695 = vpop.f32.mrf.mxu0
    %v1696 = vadd.f32 0.0, %v1695
    %1697 = vmatmul.f32.gmra.mxu0 %v1640
    %v1698 = vpop.f32.mrf.mxu0
    %v1699 = vadd.f32 0.0, %v1698
    %1700 = vmatmul.f32.gmra.mxu0 %v1642
    %v1701 = vpop.f32.mrf.mxu0
    %v1702 = vadd.f32 0.0, %v1701
    %1703 = vmatmul.f32.gmra.mxu0 %v1644
    %v1704 = vpop.f32.mrf.mxu0
    %v1705 = vadd.f32 0.0, %v1704
    %1706 = vmatmul.f32.gmra.mxu0 %v1646
    %v1707 = vpop.f32.mrf.mxu0
    %v1708 = vadd.f32 0.0, %v1707
    %1709 = vmatmul.f32.gmra.mxu0 %v1648
    %v1710 = vpop.f32.mrf.mxu0
    %v1711 = vadd.f32 0.0, %v1710
    %1712 = vmatmul.f32.gmra.mxu0 %v1650
    %v1713 = vpop.f32.mrf.mxu0
    %v1714 = vadd.f32 0.0, %v1713
    %1715 = vdwg.mxu0
    %v1716 = vadd.f32 %v1572, %v940
    %v1717 = vadd.f32 %v1574, %v940
    %v1718 = vadd.f32 %v1576, %v940
    %v1719 = vadd.f32 %v1578, %v940
    %v1720 = vadd.f32 %v1580, %v940
    %v1721 = vadd.f32 %v1582, %v940
    %v1722 = vadd.f32 %v1584, %v940
    %v1723 = vadd.f32 %v1586, %v940
    %v1724 = vadd.f32 %v1588, %v940
    %v1725 = vadd.f32 %v1590, %v940
    %v1726 = vadd.f32 %v1592, %v940
    %v1727 = vadd.f32 %v1594, %v940
    %v1728 = vadd.f32 %v1596, %v940
    %v1729 = vadd.f32 %v1598, %v940
    %v1730 = vadd.f32 %v1600, %v940
    %v1731 = vadd.f32 %v1602, %v940
    %v1732 = vmax.f32 %v1669, 1.1754944e-38
    %v1733 = vmax.f32 %v1672, 1.1754944e-38
    %v1734 = vmax.f32 %v1675, 1.1754944e-38
    %v1735 = vmax.f32 %v1678, 1.1754944e-38
    %v1736 = vmax.f32 %v1681, 1.1754944e-38
    %v1737 = vmax.f32 %v1684, 1.1754944e-38
    %v1738 = vmax.f32 %v1687, 1.1754944e-38
    %v1739 = vmax.f32 %v1690, 1.1754944e-38
    %v1740 = vmax.f32 %v1693, 1.1754944e-38
    %v1741 = vmax.f32 %v1696, 1.1754944e-38
    %v1742 = vmax.f32 %v1699, 1.1754944e-38
    %v1743 = vmax.f32 %v1702, 1.1754944e-38
    %v1744 = vmax.f32 %v1705, 1.1754944e-38
    %v1745 = vmax.f32 %v1708, 1.1754944e-38
    %v1746 = vmax.f32 %v1711, 1.1754944e-38
    %v1747 = vmax.f32 %v1714, 1.1754944e-38
    %v1748 = vlog2.pop %v1732
    %v1749 = vmul.f32 %v1748, 0.6931472
    %v1750 = vlog2.pop %v1733
    %v1751 = vmul.f32 %v1750, 0.6931472
    %v1752 = vlog2.pop %v1734
    %v1753 = vmul.f32 %v1752, 0.6931472
    %v1754 = vlog2.pop %v1735
    %v1755 = vmul.f32 %v1754, 0.6931472
    %v1756 = vlog2.pop %v1736
    %v1757 = vmul.f32 %v1756, 0.6931472
    %v1758 = vlog2.pop %v1737
    %v1759 = vmul.f32 %v1758, 0.6931472
    %v1760 = vlog2.pop %v1738
    %v1761 = vmul.f32 %v1760, 0.6931472
    %v1762 = vlog2.pop %v1739
    %v1763 = vmul.f32 %v1762, 0.6931472
    %v1764 = vlog2.pop %v1740
    %v1765 = vmul.f32 %v1764, 0.6931472
    %v1766 = vlog2.pop %v1741
    %v1767 = vmul.f32 %v1766, 0.6931472
    %v1768 = vlog2.pop %v1742
    %v1769 = vmul.f32 %v1768, 0.6931472
    %v1770 = vlog2.pop %v1743
    %v1771 = vmul.f32 %v1770, 0.6931472
    %v1772 = vlog2.pop %v1744
    %v1773 = vmul.f32 %v1772, 0.6931472
    %v1774 = vlog2.pop %v1745
    %v1775 = vmul.f32 %v1774, 0.6931472
    %v1776 = vlog2.pop %v1746
    %v1777 = vmul.f32 %v1776, 0.6931472
    %v1778 = vlog2.pop %v1747
    %v1779 = vmul.f32 %v1778, 0.6931472
    %v1780 = vadd.f32 %v1716, %v1749
    %v1781 = vadd.f32 %v1717, %v1751
    %v1782 = vadd.f32 %v1718, %v1753
    %v1783 = vadd.f32 %v1719, %v1755
    %v1784 = vadd.f32 %v1720, %v1757
    %v1785 = vadd.f32 %v1721, %v1759
    %v1786 = vadd.f32 %v1722, %v1761
    %v1787 = vadd.f32 %v1723, %v1763
    %v1788 = vadd.f32 %v1724, %v1765
    %v1789 = vadd.f32 %v1725, %v1767
    %v1790 = vadd.f32 %v1726, %v1769
    %v1791 = vadd.f32 %v1727, %v1771
    %v1792 = vadd.f32 %v1728, %v1773
    %v1793 = vadd.f32 %v1729, %v1775
    %v1794 = vadd.f32 %v1730, %v1777
    %v1795 = vadd.f32 %v1731, %v1779
    %s1796 = scalar_lea.vmem [#allocation2], 512
    %v1797 = vld [vmem:[%s1796] sm:$0xff]
    %v1798 = vld [vmem:[%s1796 + $0x8] sm:$0xff]
    %v1799 = vld [vmem:[%s1796 + $0x10] sm:$0xff]
    %v1800 = vld [vmem:[%s1796 + $0x18] sm:$0xff]
    %v1801 = vld [vmem:[%s1796 + $0x20] sm:$0xff]
    %v1802 = vld [vmem:[%s1796 + $0x28] sm:$0xff]
    %v1803 = vld [vmem:[%s1796 + $0x30] sm:$0xff]
    %v1804 = vld [vmem:[%s1796 + $0x38] sm:$0xff]
    %v1805 = vld [vmem:[%s1796 + $0x40] sm:$0xff]
    %v1806 = vld [vmem:[%s1796 + $0x48] sm:$0xff]
    %v1807 = vld [vmem:[%s1796 + $0x50] sm:$0xff]
    %v1808 = vld [vmem:[%s1796 + $0x58] sm:$0xff]
    %v1809 = vld [vmem:[%s1796 + $0x60] sm:$0xff]
    %v1810 = vld [vmem:[%s1796 + $0x68] sm:$0xff]
    %v1811 = vld [vmem:[%s1796 + $0x70] sm:$0xff]
    %v1812 = vld [vmem:[%s1796 + $0x78] sm:$0xff]
    %v1813 = vadd.f32 %v1780, %v1797
    %v1814 = vadd.f32 %v1781, %v1798
    %v1815 = vadd.f32 %v1782, %v1799
    %v1816 = vadd.f32 %v1783, %v1800
    %v1817 = vadd.f32 %v1784, %v1801
    %v1818 = vadd.f32 %v1785, %v1802
    %v1819 = vadd.f32 %v1786, %v1803
    %v1820 = vadd.f32 %v1787, %v1804
    %v1821 = vadd.f32 %v1788, %v1805
    %v1822 = vadd.f32 %v1789, %v1806
    %v1823 = vadd.f32 %v1790, %v1807
    %v1824 = vadd.f32 %v1791, %v1808
    %v1825 = vadd.f32 %v1792, %v1809
    %v1826 = vadd.f32 %v1793, %v1810
    %v1827 = vadd.f32 %v1794, %v1811
    %v1828 = vadd.f32 %v1795, %v1812
    %1829 = vmax.xlane.f32.xlu0 %v1813
    %v1830 = vpop.xlane.xlu0 %1829
    %1831 = vmax.xlane.f32.xlu0 %v1814
    %v1832 = vpop.xlane.xlu0 %1831
    %1833 = vmax.xlane.f32.xlu0 %v1815
    %v1834 = vpop.xlane.xlu0 %1833
    %1835 = vmax.xlane.f32.xlu0 %v1816
    %v1836 = vpop.xlane.xlu0 %1835
    %1837 = vmax.xlane.f32.xlu0 %v1817
    %v1838 = vpop.xlane.xlu0 %1837
    %1839 = vmax.xlane.f32.xlu0 %v1818
    %v1840 = vpop.xlane.xlu0 %1839
    %1841 = vmax.xlane.f32.xlu0 %v1819
    %v1842 = vpop.xlane.xlu0 %1841
    %1843 = vmax.xlane.f32.xlu0 %v1820
    %v1844 = vpop.xlane.xlu0 %1843
    %1845 = vmax.xlane.f32.xlu0 %v1821
    %v1846 = vpop.xlane.xlu0 %1845
    %1847 = vmax.xlane.f32.xlu0 %v1822
    %v1848 = vpop.xlane.xlu0 %1847
    %1849 = vmax.xlane.f32.xlu0 %v1823
    %v1850 = vpop.xlane.xlu0 %1849
    %1851 = vmax.xlane.f32.xlu0 %v1824
    %v1852 = vpop.xlane.xlu0 %1851
    %1853 = vmax.xlane.f32.xlu0 %v1825
    %v1854 = vpop.xlane.xlu0 %1853
    %1855 = vmax.xlane.f32.xlu0 %v1826
    %v1856 = vpop.xlane.xlu0 %1855
    %1857 = vmax.xlane.f32.xlu0 %v1827
    %v1858 = vpop.xlane.xlu0 %1857
    %1859 = vmax.xlane.f32.xlu0 %v1828
    %v1860 = vpop.xlane.xlu0 %1859
    %v1861 = vsub.f32 %v1813, %v1830
    %v1862 = vsub.f32 %v1814, %v1832
    %v1863 = vsub.f32 %v1815, %v1834
    %v1864 = vsub.f32 %v1816, %v1836
    %v1865 = vsub.f32 %v1817, %v1838
    %v1866 = vsub.f32 %v1818, %v1840
    %v1867 = vsub.f32 %v1819, %v1842
    %v1868 = vsub.f32 %v1820, %v1844
    %v1869 = vsub.f32 %v1821, %v1846
    %v1870 = vsub.f32 %v1822, %v1848
    %v1871 = vsub.f32 %v1823, %v1850
    %v1872 = vsub.f32 %v1824, %v1852
    %v1873 = vsub.f32 %v1825, %v1854
    %v1874 = vsub.f32 %v1826, %v1856
    %v1875 = vsub.f32 %v1827, %v1858
    %v1876 = vsub.f32 %v1828, %v1860
    %v1877 = vmul.f32 %v1861, 1.442695
    %v1878 = vpow.pop %v1877
    %v1879 = vmul.f32 %v1862, 1.442695
    %v1880 = vpow.pop %v1879
    %v1881 = vmul.f32 %v1863, 1.442695
    %v1882 = vpow.pop %v1881
    %v1883 = vmul.f32 %v1864, 1.442695
    %v1884 = vpow.pop %v1883
    %v1885 = vmul.f32 %v1865, 1.442695
    %v1886 = vpow.pop %v1885
    %v1887 = vmul.f32 %v1866, 1.442695
    %v1888 = vpow.pop %v1887
    %v1889 = vmul.f32 %v1867, 1.442695
    %v1890 = vpow.pop %v1889
    %v1891 = vmul.f32 %v1868, 1.442695
    %v1892 = vpow.pop %v1891
    %v1893 = vmul.f32 %v1869, 1.442695
    %v1894 = vpow.pop %v1893
    %v1895 = vmul.f32 %v1870, 1.442695
    %v1896 = vpow.pop %v1895
    %v1897 = vmul.f32 %v1871, 1.442695
    %v1898 = vpow.pop %v1897
    %v1899 = vmul.f32 %v1872, 1.442695
    %v1900 = vpow.pop %v1899
    %v1901 = vmul.f32 %v1873, 1.442695
    %v1902 = vpow.pop %v1901
    %v1903 = vmul.f32 %v1874, 1.442695
    %v1904 = vpow.pop %v1903
    %v1905 = vmul.f32 %v1875, 1.442695
    %v1906 = vpow.pop %v1905
    %v1907 = vmul.f32 %v1876, 1.442695
    %v1908 = vpow.pop %v1907
    %1909 = vmatpush.msra.mxu0 %v756
    %1910 = vmatpush.msra.mxu0 %v755
    %1911 = vmatpush.msra.mxu0 %v754
    %1912 = vmatpush.msra.mxu0 %v753
    %1913 = vmatpush.msra.mxu0 %v752
    %1914 = vmatpush.msra.mxu0 %v751
    %1915 = vmatpush.msra.mxu0 %v750
    %1916 = vmatpush.msra.mxu0 %v749
    %1917 = vmatpush.msra.mxu0 %v748
    %1918 = vmatpush.msra.mxu0 %v747
    %1919 = vmatpush.msra.mxu0 %v746
    %1920 = vmatpush.msra.mxu0 %v745
    %1921 = vmatpush.msra.mxu0 %v744
    %1922 = vmatpush.msra.mxu0 %v743
    %1923 = vmatpush.msra.mxu0 %v742
    %1924 = vmatpush.msra.mxu0 %v741
    %1925 = vmatmul.f32.gmra.mxu0 %v1878
    %v1926 = vpop.f32.mrf.mxu0
    %v1927 = vadd.f32 0.0, %v1926
    %1928 = vmatmul.f32.gmra.mxu0 %v1880
    %v1929 = vpop.f32.mrf.mxu0
    %v1930 = vadd.f32 0.0, %v1929
    %1931 = vmatmul.f32.gmra.mxu0 %v1882
    %v1932 = vpop.f32.mrf.mxu0
    %v1933 = vadd.f32 0.0, %v1932
    %1934 = vmatmul.f32.gmra.mxu0 %v1884
    %v1935 = vpop.f32.mrf.mxu0
    %v1936 = vadd.f32 0.0, %v1935
    %1937 = vmatmul.f32.gmra.mxu0 %v1886
    %v1938 = vpop.f32.mrf.mxu0
    %v1939 = vadd.f32 0.0, %v1938
    %1940 = vmatmul.f32.gmra.mxu0 %v1888
    %v1941 = vpop.f32.mrf.mxu0
    %v1942 = vadd.f32 0.0, %v1941
    %1943 = vmatmul.f32.gmra.mxu0 %v1890
    %v1944 = vpop.f32.mrf.mxu0
    %v1945 = vadd.f32 0.0, %v1944
    %1946 = vmatmul.f32.gmra.mxu0 %v1892
    %v1947 = vpop.f32.mrf.mxu0
    %v1948 = vadd.f32 0.0, %v1947
    %1949 = vmatmul.f32.gmra.mxu0 %v1894
    %v1950 = vpop.f32.mrf.mxu0
    %v1951 = vadd.f32 0.0, %v1950
    %1952 = vmatmul.f32.gmra.mxu0 %v1896
    %v1953 = vpop.f32.mrf.mxu0
    %v1954 = vadd.f32 0.0, %v1953
    %1955 = vmatmul.f32.gmra.mxu0 %v1898
    %v1956 = vpop.f32.mrf.mxu0
    %v1957 = vadd.f32 0.0, %v1956
    %1958 = vmatmul.f32.gmra.mxu0 %v1900
    %v1959 = vpop.f32.mrf.mxu0
    %v1960 = vadd.f32 0.0, %v1959
    %1961 = vmatmul.f32.gmra.mxu0 %v1902
    %v1962 = vpop.f32.mrf.mxu0
    %v1963 = vadd.f32 0.0, %v1962
    %1964 = vmatmul.f32.gmra.mxu0 %v1904
    %v1965 = vpop.f32.mrf.mxu0
    %v1966 = vadd.f32 0.0, %v1965
    %1967 = vmatmul.f32.gmra.mxu0 %v1906
    %v1968 = vpop.f32.mrf.mxu0
    %v1969 = vadd.f32 0.0, %v1968
    %1970 = vmatmul.f32.gmra.mxu0 %v1908
    %v1971 = vpop.f32.mrf.mxu0
    %v1972 = vadd.f32 0.0, %v1971
    %1973 = vdwg.mxu0
    %v1974 = vadd.f32 %v1830, %v940
    %v1975 = vadd.f32 %v1832, %v940
    %v1976 = vadd.f32 %v1834, %v940
    %v1977 = vadd.f32 %v1836, %v940
    %v1978 = vadd.f32 %v1838, %v940
    %v1979 = vadd.f32 %v1840, %v940
    %v1980 = vadd.f32 %v1842, %v940
    %v1981 = vadd.f32 %v1844, %v940
    %v1982 = vadd.f32 %v1846, %v940
    %v1983 = vadd.f32 %v1848, %v940
    %v1984 = vadd.f32 %v1850, %v940
    %v1985 = vadd.f32 %v1852, %v940
    %v1986 = vadd.f32 %v1854, %v940
    %v1987 = vadd.f32 %v1856, %v940
    %v1988 = vadd.f32 %v1858, %v940
    %v1989 = vadd.f32 %v1860, %v940
    %v1990 = vmax.f32 %v1927, 1.1754944e-38
    %v1991 = vmax.f32 %v1930, 1.1754944e-38
    %v1992 = vmax.f32 %v1933, 1.1754944e-38
    %v1993 = vmax.f32 %v1936, 1.1754944e-38
    %v1994 = vmax.f32 %v1939, 1.1754944e-38
    %v1995 = vmax.f32 %v1942, 1.1754944e-38
    %v1996 = vmax.f32 %v1945, 1.1754944e-38
    %v1997 = vmax.f32 %v1948, 1.1754944e-38
    %v1998 = vmax.f32 %v1951, 1.1754944e-38
    %v1999 = vmax.f32 %v1954, 1.1754944e-38
    %v2000 = vmax.f32 %v1957, 1.1754944e-38
    %v2001 = vmax.f32 %v1960, 1.1754944e-38
    %v2002 = vmax.f32 %v1963, 1.1754944e-38
    %v2003 = vmax.f32 %v1966, 1.1754944e-38
    %v2004 = vmax.f32 %v1969, 1.1754944e-38
    %v2005 = vmax.f32 %v1972, 1.1754944e-38
    %v2006 = vlog2.pop %v1990
    %v2007 = vmul.f32 %v2006, 0.6931472
    %v2008 = vlog2.pop %v1991
    %v2009 = vmul.f32 %v2008, 0.6931472
    %v2010 = vlog2.pop %v1992
    %v2011 = vmul.f32 %v2010, 0.6931472
    %v2012 = vlog2.pop %v1993
    %v2013 = vmul.f32 %v2012, 0.6931472
    %v2014 = vlog2.pop %v1994
    %v2015 = vmul.f32 %v2014, 0.6931472
    %v2016 = vlog2.pop %v1995
    %v2017 = vmul.f32 %v2016, 0.6931472
    %v2018 = vlog2.pop %v1996
    %v2019 = vmul.f32 %v2018, 0.6931472
    %v2020 = vlog2.pop %v1997
    %v2021 = vmul.f32 %v2020, 0.6931472
    %v2022 = vlog2.pop %v1998
    %v2023 = vmul.f32 %v2022, 0.6931472
    %v2024 = vlog2.pop %v1999
    %v2025 = vmul.f32 %v2024, 0.6931472
    %v2026 = vlog2.pop %v2000
    %v2027 = vmul.f32 %v2026, 0.6931472
    %v2028 = vlog2.pop %v2001
    %v2029 = vmul.f32 %v2028, 0.6931472
    %v2030 = vlog2.pop %v2002
    %v2031 = vmul.f32 %v2030, 0.6931472
    %v2032 = vlog2.pop %v2003
    %v2033 = vmul.f32 %v2032, 0.6931472
    %v2034 = vlog2.pop %v2004
    %v2035 = vmul.f32 %v2034, 0.6931472
    %v2036 = vlog2.pop %v2005
    %v2037 = vmul.f32 %v2036, 0.6931472
    %v2038 = vadd.f32 %v1974, %v2007
    %v2039 = vadd.f32 %v1975, %v2009
    %v2040 = vadd.f32 %v1976, %v2011
    %v2041 = vadd.f32 %v1977, %v2013
    %v2042 = vadd.f32 %v1978, %v2015
    %v2043 = vadd.f32 %v1979, %v2017
    %v2044 = vadd.f32 %v1980, %v2019
    %v2045 = vadd.f32 %v1981, %v2021
    %v2046 = vadd.f32 %v1982, %v2023
    %v2047 = vadd.f32 %v1983, %v2025
    %v2048 = vadd.f32 %v1984, %v2027
    %v2049 = vadd.f32 %v1985, %v2029
    %v2050 = vadd.f32 %v1986, %v2031
    %v2051 = vadd.f32 %v1987, %v2033
    %v2052 = vadd.f32 %v1988, %v2035
    %v2053 = vadd.f32 %v1989, %v2037
    %s2054 = scalar_lea.vmem [#allocation2], 640
    %v2055 = vld [vmem:[%s2054] sm:$0xff]
    %v2056 = vld [vmem:[%s2054 + $0x8] sm:$0xff]
    %v2057 = vld [vmem:[%s2054 + $0x10] sm:$0xff]
    %v2058 = vld [vmem:[%s2054 + $0x18] sm:$0xff]
    %v2059 = vld [vmem:[%s2054 + $0x20] sm:$0xff]
    %v2060 = vld [vmem:[%s2054 + $0x28] sm:$0xff]
    %v2061 = vld [vmem:[%s2054 + $0x30] sm:$0xff]
    %v2062 = vld [vmem:[%s2054 + $0x38] sm:$0xff]
    %v2063 = vld [vmem:[%s2054 + $0x40] sm:$0xff]
    %v2064 = vld [vmem:[%s2054 + $0x48] sm:$0xff]
    %v2065 = vld [vmem:[%s2054 + $0x50] sm:$0xff]
    %v2066 = vld [vmem:[%s2054 + $0x58] sm:$0xff]
    %v2067 = vld [vmem:[%s2054 + $0x60] sm:$0xff]
    %v2068 = vld [vmem:[%s2054 + $0x68] sm:$0xff]
    %v2069 = vld [vmem:[%s2054 + $0x70] sm:$0xff]
    %v2070 = vld [vmem:[%s2054 + $0x78] sm:$0xff]
    %v2071 = vadd.f32 %v2038, %v2055
    %v2072 = vadd.f32 %v2039, %v2056
    %v2073 = vadd.f32 %v2040, %v2057
    %v2074 = vadd.f32 %v2041, %v2058
    %v2075 = vadd.f32 %v2042, %v2059
    %v2076 = vadd.f32 %v2043, %v2060
    %v2077 = vadd.f32 %v2044, %v2061
    %v2078 = vadd.f32 %v2045, %v2062
    %v2079 = vadd.f32 %v2046, %v2063
    %v2080 = vadd.f32 %v2047, %v2064
    %v2081 = vadd.f32 %v2048, %v2065
    %v2082 = vadd.f32 %v2049, %v2066
    %v2083 = vadd.f32 %v2050, %v2067
    %v2084 = vadd.f32 %v2051, %v2068
    %v2085 = vadd.f32 %v2052, %v2069
    %v2086 = vadd.f32 %v2053, %v2070
    %2087 = vmax.xlane.f32.xlu0 %v2071
    %v2088 = vpop.xlane.xlu0 %2087
    %2089 = vmax.xlane.f32.xlu0 %v2072
    %v2090 = vpop.xlane.xlu0 %2089
    %2091 = vmax.xlane.f32.xlu0 %v2073
    %v2092 = vpop.xlane.xlu0 %2091
    %2093 = vmax.xlane.f32.xlu0 %v2074
    %v2094 = vpop.xlane.xlu0 %2093
    %2095 = vmax.xlane.f32.xlu0 %v2075
    %v2096 = vpop.xlane.xlu0 %2095
    %2097 = vmax.xlane.f32.xlu0 %v2076
    %v2098 = vpop.xlane.xlu0 %2097
    %2099 = vmax.xlane.f32.xlu0 %v2077
    %v2100 = vpop.xlane.xlu0 %2099
    %2101 = vmax.xlane.f32.xlu0 %v2078
    %v2102 = vpop.xlane.xlu0 %2101
    %2103 = vmax.xlane.f32.xlu0 %v2079
    %v2104 = vpop.xlane.xlu0 %2103
    %2105 = vmax.xlane.f32.xlu0 %v2080
    %v2106 = vpop.xlane.xlu0 %2105
    %2107 = vmax.xlane.f32.xlu0 %v2081
    %v2108 = vpop.xlane.xlu0 %2107
    %2109 = vmax.xlane.f32.xlu0 %v2082
    %v2110 = vpop.xlane.xlu0 %2109
    %2111 = vmax.xlane.f32.xlu0 %v2083
    %v2112 = vpop.xlane.xlu0 %2111
    %2113 = vmax.xlane.f32.xlu0 %v2084
    %v2114 = vpop.xlane.xlu0 %2113
    %2115 = vmax.xlane.f32.xlu0 %v2085
    %v2116 = vpop.xlane.xlu0 %2115
    %2117 = vmax.xlane.f32.xlu0 %v2086
    %v2118 = vpop.xlane.xlu0 %2117
    %v2119 = vsub.f32 %v2071, %v2088
    %v2120 = vsub.f32 %v2072, %v2090
    %v2121 = vsub.f32 %v2073, %v2092
    %v2122 = vsub.f32 %v2074, %v2094
    %v2123 = vsub.f32 %v2075, %v2096
    %v2124 = vsub.f32 %v2076, %v2098
    %v2125 = vsub.f32 %v2077, %v2100
    %v2126 = vsub.f32 %v2078, %v2102
    %v2127 = vsub.f32 %v2079, %v2104
    %v2128 = vsub.f32 %v2080, %v2106
    %v2129 = vsub.f32 %v2081, %v2108
    %v2130 = vsub.f32 %v2082, %v2110
    %v2131 = vsub.f32 %v2083, %v2112
    %v2132 = vsub.f32 %v2084, %v2114
    %v2133 = vsub.f32 %v2085, %v2116
    %v2134 = vsub.f32 %v2086, %v2118
    %v2135 = vmul.f32 %v2119, 1.442695
    %v2136 = vpow.pop %v2135
    %v2137 = vmul.f32 %v2120, 1.442695
    %v2138 = vpow.pop %v2137
    %v2139 = vmul.f32 %v2121, 1.442695
    %v2140 = vpow.pop %v2139
    %v2141 = vmul.f32 %v2122, 1.442695
    %v2142 = vpow.pop %v2141
    %v2143 = vmul.f32 %v2123, 1.442695
    %v2144 = vpow.pop %v2143
    %v2145 = vmul.f32 %v2124, 1.442695
    %v2146 = vpow.pop %v2145
    %v2147 = vmul.f32 %v2125, 1.442695
    %v2148 = vpow.pop %v2147
    %v2149 = vmul.f32 %v2126, 1.442695
    %v2150 = vpow.pop %v2149
    %v2151 = vmul.f32 %v2127, 1.442695
    %v2152 = vpow.pop %v2151
    %v2153 = vmul.f32 %v2128, 1.442695
    %v2154 = vpow.pop %v2153
    %v2155 = vmul.f32 %v2129, 1.442695
    %v2156 = vpow.pop %v2155
    %v2157 = vmul.f32 %v2130, 1.442695
    %v2158 = vpow.pop %v2157
    %v2159 = vmul.f32 %v2131, 1.442695
    %v2160 = vpow.pop %v2159
    %v2161 = vmul.f32 %v2132, 1.442695
    %v2162 = vpow.pop %v2161
    %v2163 = vmul.f32 %v2133, 1.442695
    %v2164 = vpow.pop %v2163
    %v2165 = vmul.f32 %v2134, 1.442695
    %v2166 = vpow.pop %v2165
    %2167 = vmatpush.msra.mxu0 %v756
    %2168 = vmatpush.msra.mxu0 %v755
    %2169 = vmatpush.msra.mxu0 %v754
    %2170 = vmatpush.msra.mxu0 %v753
    %2171 = vmatpush.msra.mxu0 %v752
    %2172 = vmatpush.msra.mxu0 %v751
    %2173 = vmatpush.msra.mxu0 %v750
    %2174 = vmatpush.msra.mxu0 %v749
    %2175 = vmatpush.msra.mxu0 %v748
    %2176 = vmatpush.msra.mxu0 %v747
    %2177 = vmatpush.msra.mxu0 %v746
    %2178 = vmatpush.msra.mxu0 %v745
    %2179 = vmatpush.msra.mxu0 %v744
    %2180 = vmatpush.msra.mxu0 %v743
    %2181 = vmatpush.msra.mxu0 %v742
    %2182 = vmatpush.msra.mxu0 %v741
    %2183 = vmatmul.f32.gmra.mxu0 %v2136
    %v2184 = vpop.f32.mrf.mxu0
    %v2185 = vadd.f32 0.0, %v2184
    %2186 = vmatmul.f32.gmra.mxu0 %v2138
    %v2187 = vpop.f32.mrf.mxu0
    %v2188 = vadd.f32 0.0, %v2187
    %2189 = vmatmul.f32.gmra.mxu0 %v2140
    %v2190 = vpop.f32.mrf.mxu0
    %v2191 = vadd.f32 0.0, %v2190
    %2192 = vmatmul.f32.gmra.mxu0 %v2142
    %v2193 = vpop.f32.mrf.mxu0
    %v2194 = vadd.f32 0.0, %v2193
    %2195 = vmatmul.f32.gmra.mxu0 %v2144
    %v2196 = vpop.f32.mrf.mxu0
    %v2197 = vadd.f32 0.0, %v2196
    %2198 = vmatmul.f32.gmra.mxu0 %v2146
    %v2199 = vpop.f32.mrf.mxu0
    %v2200 = vadd.f32 0.0, %v2199
    %2201 = vmatmul.f32.gmra.mxu0 %v2148
    %v2202 = vpop.f32.mrf.mxu0
    %v2203 = vadd.f32 0.0, %v2202
    %2204 = vmatmul.f32.gmra.mxu0 %v2150
    %v2205 = vpop.f32.mrf.mxu0
    %v2206 = vadd.f32 0.0, %v2205
    %2207 = vmatmul.f32.gmra.mxu0 %v2152
    %v2208 = vpop.f32.mrf.mxu0
    %v2209 = vadd.f32 0.0, %v2208
    %2210 = vmatmul.f32.gmra.mxu0 %v2154
    %v2211 = vpop.f32.mrf.mxu0
    %v2212 = vadd.f32 0.0, %v2211
    %2213 = vmatmul.f32.gmra.mxu0 %v2156
    %v2214 = vpop.f32.mrf.mxu0
    %v2215 = vadd.f32 0.0, %v2214
    %2216 = vmatmul.f32.gmra.mxu0 %v2158
    %v2217 = vpop.f32.mrf.mxu0
    %v2218 = vadd.f32 0.0, %v2217
    %2219 = vmatmul.f32.gmra.mxu0 %v2160
    %v2220 = vpop.f32.mrf.mxu0
    %v2221 = vadd.f32 0.0, %v2220
    %2222 = vmatmul.f32.gmra.mxu0 %v2162
    %v2223 = vpop.f32.mrf.mxu0
    %v2224 = vadd.f32 0.0, %v2223
    %2225 = vmatmul.f32.gmra.mxu0 %v2164
    %v2226 = vpop.f32.mrf.mxu0
    %v2227 = vadd.f32 0.0, %v2226
    %2228 = vmatmul.f32.gmra.mxu0 %v2166
    %v2229 = vpop.f32.mrf.mxu0
    %v2230 = vadd.f32 0.0, %v2229
    %2231 = vdwg.mxu0
    %v2232 = vadd.f32 %v2088, %v940
    %v2233 = vadd.f32 %v2090, %v940
    %v2234 = vadd.f32 %v2092, %v940
    %v2235 = vadd.f32 %v2094, %v940
    %v2236 = vadd.f32 %v2096, %v940
    %v2237 = vadd.f32 %v2098, %v940
    %v2238 = vadd.f32 %v2100, %v940
    %v2239 = vadd.f32 %v2102, %v940
    %v2240 = vadd.f32 %v2104, %v940
    %v2241 = vadd.f32 %v2106, %v940
    %v2242 = vadd.f32 %v2108, %v940
    %v2243 = vadd.f32 %v2110, %v940
    %v2244 = vadd.f32 %v2112, %v940
    %v2245 = vadd.f32 %v2114, %v940
    %v2246 = vadd.f32 %v2116, %v940
    %v2247 = vadd.f32 %v2118, %v940
    %v2248 = vmax.f32 %v2185, 1.1754944e-38
    %v2249 = vmax.f32 %v2188, 1.1754944e-38
    %v2250 = vmax.f32 %v2191, 1.1754944e-38
    %v2251 = vmax.f32 %v2194, 1.1754944e-38
    %v2252 = vmax.f32 %v2197, 1.1754944e-38
    %v2253 = vmax.f32 %v2200, 1.1754944e-38
    %v2254 = vmax.f32 %v2203, 1.1754944e-38
    %v2255 = vmax.f32 %v2206, 1.1754944e-38
    %v2256 = vmax.f32 %v2209, 1.1754944e-38
    %v2257 = vmax.f32 %v2212, 1.1754944e-38
    %v2258 = vmax.f32 %v2215, 1.1754944e-38
    %v2259 = vmax.f32 %v2218, 1.1754944e-38
    %v2260 = vmax.f32 %v2221, 1.1754944e-38
    %v2261 = vmax.f32 %v2224, 1.1754944e-38
    %v2262 = vmax.f32 %v2227, 1.1754944e-38
    %v2263 = vmax.f32 %v2230, 1.1754944e-38
    %v2264 = vlog2.pop %v2248
    %v2265 = vmul.f32 %v2264, 0.6931472
    %v2266 = vlog2.pop %v2249
    %v2267 = vmul.f32 %v2266, 0.6931472
    %v2268 = vlog2.pop %v2250
    %v2269 = vmul.f32 %v2268, 0.6931472
    %v2270 = vlog2.pop %v2251
    %v2271 = vmul.f32 %v2270, 0.6931472
    %v2272 = vlog2.pop %v2252
    %v2273 = vmul.f32 %v2272, 0.6931472
    %v2274 = vlog2.pop %v2253
    %v2275 = vmul.f32 %v2274, 0.6931472
    %v2276 = vlog2.pop %v2254
    %v2277 = vmul.f32 %v2276, 0.6931472
    %v2278 = vlog2.pop %v2255
    %v2279 = vmul.f32 %v2278, 0.6931472
    %v2280 = vlog2.pop %v2256
    %v2281 = vmul.f32 %v2280, 0.6931472
    %v2282 = vlog2.pop %v2257
    %v2283 = vmul.f32 %v2282, 0.6931472
    %v2284 = vlog2.pop %v2258
    %v2285 = vmul.f32 %v2284, 0.6931472
    %v2286 = vlog2.pop %v2259
    %v2287 = vmul.f32 %v2286, 0.6931472
    %v2288 = vlog2.pop %v2260
    %v2289 = vmul.f32 %v2288, 0.6931472
    %v2290 = vlog2.pop %v2261
    %v2291 = vmul.f32 %v2290, 0.6931472
    %v2292 = vlog2.pop %v2262
    %v2293 = vmul.f32 %v2292, 0.6931472
    %v2294 = vlog2.pop %v2263
    %v2295 = vmul.f32 %v2294, 0.6931472
    %v2296 = vadd.f32 %v2232, %v2265
    %v2297 = vadd.f32 %v2233, %v2267
    %v2298 = vadd.f32 %v2234, %v2269
    %v2299 = vadd.f32 %v2235, %v2271
    %v2300 = vadd.f32 %v2236, %v2273
    %v2301 = vadd.f32 %v2237, %v2275
    %v2302 = vadd.f32 %v2238, %v2277
    %v2303 = vadd.f32 %v2239, %v2279
    %v2304 = vadd.f32 %v2240, %v2281
    %v2305 = vadd.f32 %v2241, %v2283
    %v2306 = vadd.f32 %v2242, %v2285
    %v2307 = vadd.f32 %v2243, %v2287
    %v2308 = vadd.f32 %v2244, %v2289
    %v2309 = vadd.f32 %v2245, %v2291
    %v2310 = vadd.f32 %v2246, %v2293
    %v2311 = vadd.f32 %v2247, %v2295
    %s2312 = scalar_lea.vmem [#allocation2], 768
    %v2313 = vld [vmem:[%s2312] sm:$0xff]
    %v2314 = vld [vmem:[%s2312 + $0x8] sm:$0xff]
    %v2315 = vld [vmem:[%s2312 + $0x10] sm:$0xff]
    %v2316 = vld [vmem:[%s2312 + $0x18] sm:$0xff]
    %v2317 = vld [vmem:[%s2312 + $0x20] sm:$0xff]
    %v2318 = vld [vmem:[%s2312 + $0x28] sm:$0xff]
    %v2319 = vld [vmem:[%s2312 + $0x30] sm:$0xff]
    %v2320 = vld [vmem:[%s2312 + $0x38] sm:$0xff]
    %v2321 = vld [vmem:[%s2312 + $0x40] sm:$0xff]
    %v2322 = vld [vmem:[%s2312 + $0x48] sm:$0xff]
    %v2323 = vld [vmem:[%s2312 + $0x50] sm:$0xff]
    %v2324 = vld [vmem:[%s2312 + $0x58] sm:$0xff]
    %v2325 = vld [vmem:[%s2312 + $0x60] sm:$0xff]
    %v2326 = vld [vmem:[%s2312 + $0x68] sm:$0xff]
    %v2327 = vld [vmem:[%s2312 + $0x70] sm:$0xff]
    %v2328 = vld [vmem:[%s2312 + $0x78] sm:$0xff]
    %v2329 = vadd.f32 %v2296, %v2313
    %v2330 = vadd.f32 %v2297, %v2314
    %v2331 = vadd.f32 %v2298, %v2315
    %v2332 = vadd.f32 %v2299, %v2316
    %v2333 = vadd.f32 %v2300, %v2317
    %v2334 = vadd.f32 %v2301, %v2318
    %v2335 = vadd.f32 %v2302, %v2319
    %v2336 = vadd.f32 %v2303, %v2320
    %v2337 = vadd.f32 %v2304, %v2321
    %v2338 = vadd.f32 %v2305, %v2322
    %v2339 = vadd.f32 %v2306, %v2323
    %v2340 = vadd.f32 %v2307, %v2324
    %v2341 = vadd.f32 %v2308, %v2325
    %v2342 = vadd.f32 %v2309, %v2326
    %v2343 = vadd.f32 %v2310, %v2327
    %v2344 = vadd.f32 %v2311, %v2328
    %2345 = vmax.xlane.f32.xlu0 %v2329
    %v2346 = vpop.xlane.xlu0 %2345
    %2347 = vmax.xlane.f32.xlu0 %v2330
    %v2348 = vpop.xlane.xlu0 %2347
    %2349 = vmax.xlane.f32.xlu0 %v2331
    %v2350 = vpop.xlane.xlu0 %2349
    %2351 = vmax.xlane.f32.xlu0 %v2332
    %v2352 = vpop.xlane.xlu0 %2351
    %2353 = vmax.xlane.f32.xlu0 %v2333
    %v2354 = vpop.xlane.xlu0 %2353
    %2355 = vmax.xlane.f32.xlu0 %v2334
    %v2356 = vpop.xlane.xlu0 %2355
    %2357 = vmax.xlane.f32.xlu0 %v2335
    %v2358 = vpop.xlane.xlu0 %2357
    %2359 = vmax.xlane.f32.xlu0 %v2336
    %v2360 = vpop.xlane.xlu0 %2359
    %2361 = vmax.xlane.f32.xlu0 %v2337
    %v2362 = vpop.xlane.xlu0 %2361
    %2363 = vmax.xlane.f32.xlu0 %v2338
    %v2364 = vpop.xlane.xlu0 %2363
    %2365 = vmax.xlane.f32.xlu0 %v2339
    %v2366 = vpop.xlane.xlu0 %2365
    %2367 = vmax.xlane.f32.xlu0 %v2340
    %v2368 = vpop.xlane.xlu0 %2367
    %2369 = vmax.xlane.f32.xlu0 %v2341
    %v2370 = vpop.xlane.xlu0 %2369
    %2371 = vmax.xlane.f32.xlu0 %v2342
    %v2372 = vpop.xlane.xlu0 %2371
    %2373 = vmax.xlane.f32.xlu0 %v2343
    %v2374 = vpop.xlane.xlu0 %2373
    %2375 = vmax.xlane.f32.xlu0 %v2344
    %v2376 = vpop.xlane.xlu0 %2375
    %v2377 = vsub.f32 %v2329, %v2346
    %v2378 = vsub.f32 %v2330, %v2348
    %v2379 = vsub.f32 %v2331, %v2350
    %v2380 = vsub.f32 %v2332, %v2352
    %v2381 = vsub.f32 %v2333, %v2354
    %v2382 = vsub.f32 %v2334, %v2356
    %v2383 = vsub.f32 %v2335, %v2358
    %v2384 = vsub.f32 %v2336, %v2360
    %v2385 = vsub.f32 %v2337, %v2362
    %v2386 = vsub.f32 %v2338, %v2364
    %v2387 = vsub.f32 %v2339, %v2366
    %v2388 = vsub.f32 %v2340, %v2368
    %v2389 = vsub.f32 %v2341, %v2370
    %v2390 = vsub.f32 %v2342, %v2372
    %v2391 = vsub.f32 %v2343, %v2374
    %v2392 = vsub.f32 %v2344, %v2376
    %v2393 = vmul.f32 %v2377, 1.442695
    %v2394 = vpow.pop %v2393
    %v2395 = vmul.f32 %v2378, 1.442695
    %v2396 = vpow.pop %v2395
    %v2397 = vmul.f32 %v2379, 1.442695
    %v2398 = vpow.pop %v2397
    %v2399 = vmul.f32 %v2380, 1.442695
    %v2400 = vpow.pop %v2399
    %v2401 = vmul.f32 %v2381, 1.442695
    %v2402 = vpow.pop %v2401
    %v2403 = vmul.f32 %v2382, 1.442695
    %v2404 = vpow.pop %v2403
    %v2405 = vmul.f32 %v2383, 1.442695
    %v2406 = vpow.pop %v2405
    %v2407 = vmul.f32 %v2384, 1.442695
    %v2408 = vpow.pop %v2407
    %v2409 = vmul.f32 %v2385, 1.442695
    %v2410 = vpow.pop %v2409
    %v2411 = vmul.f32 %v2386, 1.442695
    %v2412 = vpow.pop %v2411
    %v2413 = vmul.f32 %v2387, 1.442695
    %v2414 = vpow.pop %v2413
    %v2415 = vmul.f32 %v2388, 1.442695
    %v2416 = vpow.pop %v2415
    %v2417 = vmul.f32 %v2389, 1.442695
    %v2418 = vpow.pop %v2417
    %v2419 = vmul.f32 %v2390, 1.442695
    %v2420 = vpow.pop %v2419
    %v2421 = vmul.f32 %v2391, 1.442695
    %v2422 = vpow.pop %v2421
    %v2423 = vmul.f32 %v2392, 1.442695
    %v2424 = vpow.pop %v2423
    %2425 = vmatpush.msra.mxu0 %v756
    %2426 = vmatpush.msra.mxu0 %v755
    %2427 = vmatpush.msra.mxu0 %v754
    %2428 = vmatpush.msra.mxu0 %v753
    %2429 = vmatpush.msra.mxu0 %v752
    %2430 = vmatpush.msra.mxu0 %v751
    %2431 = vmatpush.msra.mxu0 %v750
    %2432 = vmatpush.msra.mxu0 %v749
    %2433 = vmatpush.msra.mxu0 %v748
    %2434 = vmatpush.msra.mxu0 %v747
    %2435 = vmatpush.msra.mxu0 %v746
    %2436 = vmatpush.msra.mxu0 %v745
    %2437 = vmatpush.msra.mxu0 %v744
    %2438 = vmatpush.msra.mxu0 %v743
    %2439 = vmatpush.msra.mxu0 %v742
    %2440 = vmatpush.msra.mxu0 %v741
    %2441 = vmatmul.f32.gmra.mxu0 %v2394
    %v2442 = vpop.f32.mrf.mxu0
    %v2443 = vadd.f32 0.0, %v2442
    %2444 = vmatmul.f32.gmra.mxu0 %v2396
    %v2445 = vpop.f32.mrf.mxu0
    %v2446 = vadd.f32 0.0, %v2445
    %2447 = vmatmul.f32.gmra.mxu0 %v2398
    %v2448 = vpop.f32.mrf.mxu0
    %v2449 = vadd.f32 0.0, %v2448
    %2450 = vmatmul.f32.gmra.mxu0 %v2400
    %v2451 = vpop.f32.mrf.mxu0
    %v2452 = vadd.f32 0.0, %v2451
    %2453 = vmatmul.f32.gmra.mxu0 %v2402
    %v2454 = vpop.f32.mrf.mxu0
    %v2455 = vadd.f32 0.0, %v2454
    %2456 = vmatmul.f32.gmra.mxu0 %v2404
    %v2457 = vpop.f32.mrf.mxu0
    %v2458 = vadd.f32 0.0, %v2457
    %2459 = vmatmul.f32.gmra.mxu0 %v2406
    %v2460 = vpop.f32.mrf.mxu0
    %v2461 = vadd.f32 0.0, %v2460
    %2462 = vmatmul.f32.gmra.mxu0 %v2408
    %v2463 = vpop.f32.mrf.mxu0
    %v2464 = vadd.f32 0.0, %v2463
    %2465 = vmatmul.f32.gmra.mxu0 %v2410
    %v2466 = vpop.f32.mrf.mxu0
    %v2467 = vadd.f32 0.0, %v2466
    %2468 = vmatmul.f32.gmra.mxu0 %v2412
    %v2469 = vpop.f32.mrf.mxu0
    %v2470 = vadd.f32 0.0, %v2469
    %2471 = vmatmul.f32.gmra.mxu0 %v2414
    %v2472 = vpop.f32.mrf.mxu0
    %v2473 = vadd.f32 0.0, %v2472
    %2474 = vmatmul.f32.gmra.mxu0 %v2416
    %v2475 = vpop.f32.mrf.mxu0
    %v2476 = vadd.f32 0.0, %v2475
    %2477 = vmatmul.f32.gmra.mxu0 %v2418
    %v2478 = vpop.f32.mrf.mxu0
    %v2479 = vadd.f32 0.0, %v2478
    %2480 = vmatmul.f32.gmra.mxu0 %v2420
    %v2481 = vpop.f32.mrf.mxu0
    %v2482 = vadd.f32 0.0, %v2481
    %2483 = vmatmul.f32.gmra.mxu0 %v2422
    %v2484 = vpop.f32.mrf.mxu0
    %v2485 = vadd.f32 0.0, %v2484
    %2486 = vmatmul.f32.gmra.mxu0 %v2424
    %v2487 = vpop.f32.mrf.mxu0
    %v2488 = vadd.f32 0.0, %v2487
    %2489 = vdwg.mxu0
    %v2490 = vadd.f32 %v2346, %v940
    %v2491 = vadd.f32 %v2348, %v940
    %v2492 = vadd.f32 %v2350, %v940
    %v2493 = vadd.f32 %v2352, %v940
    %v2494 = vadd.f32 %v2354, %v940
    %v2495 = vadd.f32 %v2356, %v940
    %v2496 = vadd.f32 %v2358, %v940
    %v2497 = vadd.f32 %v2360, %v940
    %v2498 = vadd.f32 %v2362, %v940
    %v2499 = vadd.f32 %v2364, %v940
    %v2500 = vadd.f32 %v2366, %v940
    %v2501 = vadd.f32 %v2368, %v940
    %v2502 = vadd.f32 %v2370, %v940
    %v2503 = vadd.f32 %v2372, %v940
    %v2504 = vadd.f32 %v2374, %v940
    %v2505 = vadd.f32 %v2376, %v940
    %v2506 = vmax.f32 %v2443, 1.1754944e-38
    %v2507 = vmax.f32 %v2446, 1.1754944e-38
    %v2508 = vmax.f32 %v2449, 1.1754944e-38
    %v2509 = vmax.f32 %v2452, 1.1754944e-38
    %v2510 = vmax.f32 %v2455, 1.1754944e-38
    %v2511 = vmax.f32 %v2458, 1.1754944e-38
    %v2512 = vmax.f32 %v2461, 1.1754944e-38
    %v2513 = vmax.f32 %v2464, 1.1754944e-38
    %v2514 = vmax.f32 %v2467, 1.1754944e-38
    %v2515 = vmax.f32 %v2470, 1.1754944e-38
    %v2516 = vmax.f32 %v2473, 1.1754944e-38
    %v2517 = vmax.f32 %v2476, 1.1754944e-38
    %v2518 = vmax.f32 %v2479, 1.1754944e-38
    %v2519 = vmax.f32 %v2482, 1.1754944e-38
    %v2520 = vmax.f32 %v2485, 1.1754944e-38
    %v2521 = vmax.f32 %v2488, 1.1754944e-38
    %v2522 = vlog2.pop %v2506
    %v2523 = vmul.f32 %v2522, 0.6931472
    %v2524 = vlog2.pop %v2507
    %v2525 = vmul.f32 %v2524, 0.6931472
    %v2526 = vlog2.pop %v2508
    %v2527 = vmul.f32 %v2526, 0.6931472
    %v2528 = vlog2.pop %v2509
    %v2529 = vmul.f32 %v2528, 0.6931472
    %v2530 = vlog2.pop %v2510
    %v2531 = vmul.f32 %v2530, 0.6931472
    %v2532 = vlog2.pop %v2511
    %v2533 = vmul.f32 %v2532, 0.6931472
    %v2534 = vlog2.pop %v2512
    %v2535 = vmul.f32 %v2534, 0.6931472
    %v2536 = vlog2.pop %v2513
    %v2537 = vmul.f32 %v2536, 0.6931472
    %v2538 = vlog2.pop %v2514
    %v2539 = vmul.f32 %v2538, 0.6931472
    %v2540 = vlog2.pop %v2515
    %v2541 = vmul.f32 %v2540, 0.6931472
    %v2542 = vlog2.pop %v2516
    %v2543 = vmul.f32 %v2542, 0.6931472
    %v2544 = vlog2.pop %v2517
    %v2545 = vmul.f32 %v2544, 0.6931472
    %v2546 = vlog2.pop %v2518
    %v2547 = vmul.f32 %v2546, 0.6931472
    %v2548 = vlog2.pop %v2519
    %v2549 = vmul.f32 %v2548, 0.6931472
    %v2550 = vlog2.pop %v2520
    %v2551 = vmul.f32 %v2550, 0.6931472
    %v2552 = vlog2.pop %v2521
    %v2553 = vmul.f32 %v2552, 0.6931472
    %v2554 = vadd.f32 %v2490, %v2523
    %v2555 = vadd.f32 %v2491, %v2525
    %v2556 = vadd.f32 %v2492, %v2527
    %v2557 = vadd.f32 %v2493, %v2529
    %v2558 = vadd.f32 %v2494, %v2531
    %v2559 = vadd.f32 %v2495, %v2533
    %v2560 = vadd.f32 %v2496, %v2535
    %v2561 = vadd.f32 %v2497, %v2537
    %v2562 = vadd.f32 %v2498, %v2539
    %v2563 = vadd.f32 %v2499, %v2541
    %v2564 = vadd.f32 %v2500, %v2543
    %v2565 = vadd.f32 %v2501, %v2545
    %v2566 = vadd.f32 %v2502, %v2547
    %v2567 = vadd.f32 %v2503, %v2549
    %v2568 = vadd.f32 %v2504, %v2551
    %v2569 = vadd.f32 %v2505, %v2553
    %s2570 = scalar_lea.vmem [#allocation2], 896
    %v2571 = vld [vmem:[%s2570] sm:$0xff]
    %v2572 = vld [vmem:[%s2570 + $0x8] sm:$0xff]
    %v2573 = vld [vmem:[%s2570 + $0x10] sm:$0xff]
    %v2574 = vld [vmem:[%s2570 + $0x18] sm:$0xff]
    %v2575 = vld [vmem:[%s2570 + $0x20] sm:$0xff]
    %v2576 = vld [vmem:[%s2570 + $0x28] sm:$0xff]
    %v2577 = vld [vmem:[%s2570 + $0x30] sm:$0xff]
    %v2578 = vld [vmem:[%s2570 + $0x38] sm:$0xff]
    %v2579 = vld [vmem:[%s2570 + $0x40] sm:$0xff]
    %v2580 = vld [vmem:[%s2570 + $0x48] sm:$0xff]
    %v2581 = vld [vmem:[%s2570 + $0x50] sm:$0xff]
    %v2582 = vld [vmem:[%s2570 + $0x58] sm:$0xff]
    %v2583 = vld [vmem:[%s2570 + $0x60] sm:$0xff]
    %v2584 = vld [vmem:[%s2570 + $0x68] sm:$0xff]
    %v2585 = vld [vmem:[%s2570 + $0x70] sm:$0xff]
    %v2586 = vld [vmem:[%s2570 + $0x78] sm:$0xff]
    %v2587 = vadd.f32 %v2554, %v2571
    %v2588 = vadd.f32 %v2555, %v2572
    %v2589 = vadd.f32 %v2556, %v2573
    %v2590 = vadd.f32 %v2557, %v2574
    %v2591 = vadd.f32 %v2558, %v2575
    %v2592 = vadd.f32 %v2559, %v2576
    %v2593 = vadd.f32 %v2560, %v2577
    %v2594 = vadd.f32 %v2561, %v2578
    %v2595 = vadd.f32 %v2562, %v2579
    %v2596 = vadd.f32 %v2563, %v2580
    %v2597 = vadd.f32 %v2564, %v2581
    %v2598 = vadd.f32 %v2565, %v2582
    %v2599 = vadd.f32 %v2566, %v2583
    %v2600 = vadd.f32 %v2567, %v2584
    %v2601 = vadd.f32 %v2568, %v2585
    %v2602 = vadd.f32 %v2569, %v2586
    %2603 = vxpose.xlu0.b32.start [1/16] %v2587, 128
    %2604 = vxpose.xlu0.b32.cont [2/16] %v2588, 128
    %2605 = vxpose.xlu0.b32.cont [3/16] %v2589, 128
    %2606 = vxpose.xlu0.b32.cont [4/16] %v2590, 128
    %2607 = vxpose.xlu0.b32.cont [5/16] %v2591, 128
    %2608 = vxpose.xlu0.b32.cont [6/16] %v2592, 128
    %2609 = vxpose.xlu0.b32.cont [7/16] %v2593, 128
    %2610 = vxpose.xlu0.b32.cont [8/16] %v2594, 128
    %2611 = vxpose.xlu0.b32.cont [9/16] %v2595, 128
    %2612 = vxpose.xlu0.b32.cont [10/16] %v2596, 128
    %2613 = vxpose.xlu0.b32.cont [11/16] %v2597, 128
    %2614 = vxpose.xlu0.b32.cont [12/16] %v2598, 128
    %2615 = vxpose.xlu0.b32.cont [13/16] %v2599, 128
    %2616 = vxpose.xlu0.b32.cont [14/16] %v2600, 128
    %2617 = vxpose.xlu0.b32.cont [15/16] %v2601, 128
    %2618 = vxpose.xlu0.b32.end [16/16] %v2602, 128
    %v2619 = vpop.trf.xlu0
    %v2620 = vpop.trf.xlu0
    %v2621 = vpop.trf.xlu0
    %v2622 = vpop.trf.xlu0
    %v2623 = vpop.trf.xlu0
    %v2624 = vpop.trf.xlu0
    %v2625 = vpop.trf.xlu0
    %v2626 = vpop.trf.xlu0
    %v2627 = vpop.trf.xlu0
    %v2628 = vpop.trf.xlu0
    %v2629 = vpop.trf.xlu0
    %v2630 = vpop.trf.xlu0
    %v2631 = vpop.trf.xlu0
    %v2632 = vpop.trf.xlu0
    %v2633 = vpop.trf.xlu0
    %v2634 = vpop.trf.xlu0
    %v2635 = vmax.f32 %v2619, %v2623
    %v2636 = vmax.f32 %v2620, %v2624
    %v2637 = vmax.f32 %v2621, %v2625
    %v2638 = vmax.f32 %v2622, %v2626
    %v2639 = vmax.f32 %v2635, %v2627
    %v2640 = vmax.f32 %v2636, %v2628
    %v2641 = vmax.f32 %v2637, %v2629
    %v2642 = vmax.f32 %v2638, %v2630
    %v2643 = vmax.f32 %v2639, %v2631
    %v2644 = vmax.f32 %v2640, %v2632
    %v2645 = vmax.f32 %v2641, %v2633
    %v2646 = vmax.f32 %v2642, %v2634
    %v2647 = vmax.f32 %v2643, %v2644
    %v2648 = vmax.f32 %v2645, %v2646
    %v2649 = vmax.f32 %v2647, %v2648
    %v2650 = vrot.slane %v2649, 4
    %v2651 = vmax.f32 %v2649, %v2650
    %v2652 = vrot.slane %v2651, 2
    %v2653 = vmax.f32 %v2651, %v2652
    %v2654 = vrot.slane %v2653, 1
    %v2655 = vmax.f32 %v2653, %v2654
    %v2656 = vsub.f32 %v2619, %v2655
    %v2657 = vsub.f32 %v2620, %v2655
    %v2658 = vsub.f32 %v2621, %v2655
    %v2659 = vsub.f32 %v2622, %v2655
    %v2660 = vsub.f32 %v2623, %v2655
    %v2661 = vsub.f32 %v2624, %v2655
    %v2662 = vsub.f32 %v2625, %v2655
    %v2663 = vsub.f32 %v2626, %v2655
    %v2664 = vsub.f32 %v2627, %v2655
    %v2665 = vsub.f32 %v2628, %v2655
    %v2666 = vsub.f32 %v2629, %v2655
    %v2667 = vsub.f32 %v2630, %v2655
    %v2668 = vsub.f32 %v2631, %v2655
    %v2669 = vsub.f32 %v2632, %v2655
    %v2670 = vsub.f32 %v2633, %v2655
    %v2671 = vsub.f32 %v2634, %v2655
    %v2672 = vmul.f32 %v2656, 1.442695
    %v2673 = vpow.pop %v2672
    %v2674 = vmul.f32 %v2657, 1.442695
    %v2675 = vpow.pop %v2674
    %v2676 = vmul.f32 %v2658, 1.442695
    %v2677 = vpow.pop %v2676
    %v2678 = vmul.f32 %v2659, 1.442695
    %v2679 = vpow.pop %v2678
    %v2680 = vmul.f32 %v2660, 1.442695
    %v2681 = vpow.pop %v2680
    %v2682 = vmul.f32 %v2661, 1.442695
    %v2683 = vpow.pop %v2682
    %v2684 = vmul.f32 %v2662, 1.442695
    %v2685 = vpow.pop %v2684
    %v2686 = vmul.f32 %v2663, 1.442695
    %v2687 = vpow.pop %v2686
    %v2688 = vmul.f32 %v2664, 1.442695
    %v2689 = vpow.pop %v2688
    %v2690 = vmul.f32 %v2665, 1.442695
    %v2691 = vpow.pop %v2690
    %v2692 = vmul.f32 %v2666, 1.442695
    %v2693 = vpow.pop %v2692
    %v2694 = vmul.f32 %v2667, 1.442695
    %v2695 = vpow.pop %v2694
    %v2696 = vmul.f32 %v2668, 1.442695
    %v2697 = vpow.pop %v2696
    %v2698 = vmul.f32 %v2669, 1.442695
    %v2699 = vpow.pop %v2698
    %v2700 = vmul.f32 %v2670, 1.442695
    %v2701 = vpow.pop %v2700
    %v2702 = vmul.f32 %v2671, 1.442695
    %v2703 = vpow.pop %v2702
    %v2704 = vadd.f32 %v2673, %v2675
    %v2705 = vadd.f32 %v2704, %v2677
    %v2706 = vadd.f32 %v2705, %v2679
    %v2707 = vadd.f32 %v2706, %v2681
    %v2708 = vadd.f32 %v2707, %v2683
    %v2709 = vadd.f32 %v2708, %v2685
    %v2710 = vadd.f32 %v2709, %v2687
    %v2711 = vadd.f32 %v2710, %v2689
    %v2712 = vadd.f32 %v2711, %v2691
    %v2713 = vadd.f32 %v2712, %v2693
    %v2714 = vadd.f32 %v2713, %v2695
    %v2715 = vadd.f32 %v2714, %v2697
    %v2716 = vadd.f32 %v2715, %v2699
    %v2717 = vadd.f32 %v2716, %v2701
    %v2718 = vadd.f32 %v2717, %v2703
    %v2719 = vrot.slane %v2718, 4
    %v2720 = vadd.f32 %v2718, %v2719
    %v2721 = vrot.slane %v2720, 2
    %v2722 = vadd.f32 %v2720, %v2721
    %v2723 = vrot.slane %v2722, 1
    %v2724 = vadd.f32 %v2722, %v2723
    %v2725 = vlog2.pop %v2724
    %v2726 = vmul.f32 %v2725, 0.6931472
    %v2727 = vadd.f32 %v2655, %v2726
    %2728 = vst [vmem:[#allocation9] sm:$0x1] %v2727
    // Predicated region
    $region34: #{tpu_custom_call.1} parent=1 // pred_check
      _
    $region35: #{tpu_custom_call.1} parent=1 // pred_check_branch
      %2730 = sbr.rel (0) target = $region37
    $region36: #{tpu_custom_call.1} parent=1 // pred_region
      %2732 = vsyncadd [#allocation5], 0
      %s2734 = sshll.u32 [#allocation9], 4
      %s2735 = int_to_ptr.vmem [resolvable:$true] %s2734
      %s2736 = sshll.u32 %s5, 4
      %s2737 = int_to_ptr.hbm [resolvable:$true] %s2736
      %2739 = dma.vmem_to_hbm [thread:$0]  %s2735, 16, %s2737, [#allocation5]
    $region37: #{tpu_custom_call.1} parent=1 // pred_fallthru
      _
    // Predicated region
    $region38: #{tpu_custom_call.1} parent=1 // pred_check
      _
    $region39: #{tpu_custom_call.1} parent=1 // pred_check_branch
      %2741 = sbr.rel (0) target = $region41
    $region40: #{tpu_custom_call.1} parent=1 // pred_region
      %2743 = dma.done [#allocation5], 16
    $region41: #{tpu_custom_call.1} parent=1 // pred_fallthru
      _
    %2744 = vsyncpa [#allocation4], 1
    %2745 = vsyncpa [#allocation7], 1
    %2746 = vsyncpa [#allocation5], 1

</llo_original>
